<compile_context>
chip_gen: v6e
topology: v6e:2x2x1
jax: 0.10.0
libtpu: 0.0.40
codegen_flags: <defaults>
</compile_context>

<pallas_src>
import functools
import math

import jax
import jax.numpy as jnp
import numpy as np
from jax.experimental import pallas as pl
from jax.experimental.pallas import tpu as pltpu


def _transformer_block_kernel(q_ref, k_ref, v_ref,
                              ln_ref, w_in_ref, b_in_ref, wo_ref, bo_ref,
                              o_ref,
                              qn_sc, qh_sc, m_sc, l_sc, acc_sc,
                              *, nhead, causal, eps, tl, ts):
    f32 = jnp.float32
    cdt = q_ref.dtype                       # MXU operand dtype (no forced f32 upcast)
    H = nhead
    E = q_ref.shape[-1]
    dh = E // H

    l_idx = pl.program_id(1)
    kv_idx = pl.program_id(2)
    num_kv = pl.num_programs(2)

    gamma = ln_ref[0:1].astype(f32)         # (1, E)
    beta = ln_ref[1:2].astype(f32)          # (1, E)

    def layernorm(x):                       # f32 math, returns f32
        xf = x.astype(f32)
        mu = jnp.mean(xf, axis=-1, keepdims=True)
        var = jnp.mean(jnp.square(xf - mu), axis=-1, keepdims=True)
        return (xf - mu) * jax.lax.rsqrt(var + eps) * gamma + beta

    # Single-relayout head split when the head dim is lane-aligned; otherwise the
    # slice/stack fallback (Mosaic cannot shape-cast a sub-128 lane split).
    single_relayout = (dh % 128 == 0)

    def split_heads(x2d):                   # (T, E) -> (H, T, dh)
        t = x2d.shape[0]
        if single_relayout:
            return jnp.transpose(x2d.reshape(t, H, dh), (1, 0, 2))
        return jnp.stack([x2d[:, h * dh:(h + 1) * dh] for h in range(H)], axis=0)

    def merge_heads(x3d):                   # (H, T, dh) -> (T, E)
        t = x3d.shape[1]
        if single_relayout:
            return jnp.transpose(x3d, (1, 0, 2)).reshape(t, E)
        return jnp.concatenate([x3d[h] for h in range(H)], axis=-1)

    # ---- per (batch, L-tile) init: project Q once, reset online-softmax state ----
    @pl.when(kv_idx == 0)
    def _init():
        qn32 = layernorm(q_ref[0])                                            # (TL, E) f32
        qn_sc[...] = qn32
        # Wide in-projection against pre-transposed weight (1/sqrt(dh) already folded in).
        qp = jnp.dot(qn32.astype(cdt), w_in_ref[0],
                     preferred_element_type=f32) + b_in_ref[0:1]              # (TL, E) f32
        qh_sc[...] = split_heads(qp.astype(cdt))                              # (H, TL, dh)
        m_sc[...] = jnp.full(m_sc.shape, -jnp.inf, m_sc.dtype)
        l_sc[...] = jnp.zeros(l_sc.shape, l_sc.dtype)
        acc_sc[...] = jnp.zeros(acc_sc.shape, acc_sc.dtype)

    # ---- per KV-tile online-softmax update ----
    def _kv_step():
        kn = layernorm(k_ref[0]).astype(cdt)                                  # (TS, E)
        vn = layernorm(v_ref[0]).astype(cdt)
        kp = jnp.dot(kn, w_in_ref[1], preferred_element_type=f32) + b_in_ref[1:2]
        vp = jnp.dot(vn, w_in_ref[2], preferred_element_type=f32) + b_in_ref[2:3]
        kh = split_heads(kp.astype(cdt))                                      # (H, TS, dh)
        vh = split_heads(vp.astype(cdt))                                      # (H, TS, dh)

        # Heads-batched scores; q already scaled via the folded weight.
        s = jnp.einsum('hqd,hkd->hqk', qh_sc[...], kh,
                       preferred_element_type=f32)                            # (H, TL, TS) f32

        if causal:
            # One 2-D mask (global row/col via tile offsets), broadcast over heads.
            rows = l_idx * tl + jax.lax.broadcasted_iota(jnp.int32, (tl, ts), 0)
            cols = kv_idx * ts + jax.lax.broadcasted_iota(jnp.int32, (tl, ts), 1)
            s = jnp.where((cols > rows)[None, :, :], f32(-1e30), s)

        m_prev = m_sc[...]                                                    # (H, TL, 1)
        m_new = jnp.maximum(m_prev, jnp.max(s, axis=-1, keepdims=True))
        alpha = jnp.exp(m_prev - m_new)
        p = jnp.exp(s - m_new)
        l_sc[...] = alpha * l_sc[...] + jnp.sum(p, axis=-1, keepdims=True)
        acc_sc[...] = alpha * acc_sc[...] + jnp.einsum(
            'hqk,hkd->hqd', p.astype(cdt), vh, preferred_element_type=f32)
        m_sc[...] = m_new
        # attn dropout: identity (eval mode)

    if causal:
        # Skip KV tiles strictly above the diagonal of this query tile.
        @pl.when(kv_idx * ts <= l_idx * tl + (tl - 1))
        def _():
            _kv_step()
    else:
        _kv_step()

    # ---- finalize: normalize, merge heads, out-proj, residual ----
    @pl.when(kv_idx == num_kv - 1)
    def _finalize():
        ctx = acc_sc[...] * pl.reciprocal(l_sc[...], approx=True)             # (H, TL, dh) f32
        ctx2d = merge_heads(ctx).astype(cdt)                                  # (TL, E)
        attn_out = jnp.dot(ctx2d, wo_ref[...], preferred_element_type=f32) + bo_ref[...]
        # Residual with the layernormed query (res_dropout: identity, eval mode).
        o_ref[0] = (qn_sc[...] + attn_out).astype(o_ref.dtype)


def _pick_tile(dim, prefs):
    for t in prefs:
        if t <= dim and dim % t == 0:
            return t
    return dim


def _estimate_vmem_bytes(E, H, dh, tl, ts, cdt_bytes, out_bytes):
    weights = (3 * E * E + E * E) * cdt_bytes                 # single-buffered (Buffered(1))
    small = (2 * E + 3 * E + E) * 4                           # ln / biases (f32)
    acts = 2 * (tl * E + 2 * ts * E) * cdt_bytes              # q,k,v blocks, double-buffered
    outs = 2 * tl * E * out_bytes
    scratch = (tl * E * 4 + H * tl * dh * cdt_bytes
               + 2 * H * tl * 128 * 4                          # m,l padded to 128 lanes
               + H * tl * dh * 4)
    inter = 3 * H * tl * ts * 4 + 2 * ts * E * 4 + 2 * ts * E * cdt_bytes
    return weights + small + acts + outs + scratch + inter


def transformer_block_forward(query, key, value, params, *, nhead,
                              causal_attn_mask=False, eps=1e-5,
                              compute_dtype=None, seq_first=True):
    """query: (L, N, E), key/value: (S, N, E) when seq_first (PyTorch layout);
    pass seq_first=False with batch-major (N, T, E) inputs to skip the transposes."""
    if seq_first:
        # PyTorch seq-first API parity; this is one extra HBM pass each way.
        q = jnp.transpose(query, (1, 0, 2))
        k = jnp.transpose(key, (1, 0, 2))
        v = jnp.transpose(value, (1, 0, 2))
    else:
        q, k, v = query, key, value

    N, L, E = q.shape
    S = k.shape[1]
    assert E % nhead == 0
    dh = E // nhead
    scale = 1.0 / math.sqrt(dh)

    cdt = compute_dtype if compute_dtype is not None else q.dtype
    q = q.astype(cdt)
    k = k.astype(cdt)
    v = v.astype(cdt)

    # Tile sizes: L tile bounds the per-step score footprint and feeds megacore;
    # KV tile is the online-softmax (flash) axis.  Real deployments should use
    # E a multiple of 128 and L/S multiples of 8 for lane-dense layouts.
    TL = _pick_tile(L, (256, 128, 64, 32, 16, 8))
    TS = _pick_tile(S, (512, 256, 128, 64, 32, 16, 8))
    nL = L // TL
    nKV = S // TS

    # Host-side (one-time) weight prep: pre-transpose for x @ W, fold the 1/sqrt(dh) scale
    # into the q projection (weight AND bias), pack into a (3, E, E) stack.
    w = params["in_proj_weight"]                               # (3E, E), torch layout (y = x @ W^T)
    wq_t = jnp.transpose(w[0:E]) * jnp.asarray(scale, w.dtype)
    wk_t = jnp.transpose(w[E:2 * E])
    wv_t = jnp.transpose(w[2 * E:3 * E])
    w_in = jnp.stack([wq_t, wk_t, wv_t], axis=0).astype(cdt)   # (3, E, E)

    b_in = params["in_proj_bias"].reshape(3, E).astype(jnp.float32)
    b_in = b_in * jnp.array([scale, 1.0, 1.0], jnp.float32)[:, None]   # (3, E)

    wo_t = jnp.transpose(params["out_proj_weight"]).astype(cdt)        # (E, E)
    bo = params["out_proj_bias"].reshape(1, E).astype(jnp.float32)     # (1, E)

    ln = jnp.stack([params["ln_gamma"], params["ln_beta"]], axis=0).astype(jnp.float32)

    kernel = functools.partial(_transformer_block_kernel,
                               nhead=nhead, causal=bool(causal_attn_mask),
                               eps=eps, tl=TL, ts=TS)

    def _const_spec(shape):
        # Replicated operands: constant index map => single-buffer them (Buffered(1)).
        index_map = lambda b, l, kv: tuple(0 for _ in shape)
        try:
            return pl.BlockSpec(shape, index_map, pipeline_mode=pl.Buffered(1))
        except TypeError:   # older API without pipeline_mode: fall back to default buffering
            return pl.BlockSpec(shape, index_map)

    cdt_bytes = jnp.dtype(cdt).itemsize
    out_bytes = jnp.dtype(q.dtype).itemsize
    est = _estimate_vmem_bytes(E, nhead, dh, TL, TS, cdt_bytes, out_bytes)
    vmem_limit = int(min(max(1.5 * est, 32 * 1024 * 1024), 100 * 1024 * 1024))

    out = pl.pallas_call(
        kernel,
        out_shape=jax.ShapeDtypeStruct((N, L, E), q.dtype),
        grid=(N, nL, nKV),
        in_specs=[
            pl.BlockSpec((1, TL, E), lambda b, l, kv: (b, l, 0)),    # q (per L tile)
            pl.BlockSpec((1, TS, E), lambda b, l, kv: (b, kv, 0)),   # k (per KV tile)
            pl.BlockSpec((1, TS, E), lambda b, l, kv: (b, kv, 0)),   # v (per KV tile)
            _const_spec((2, E)),        # layernorm gamma/beta
            _const_spec((3, E, E)),     # packed, pre-transposed in-proj weights
            _const_spec((3, E)),        # in-proj bias (row-indexed in kernel)
            _const_spec((E, E)),        # pre-transposed out-proj weight
            _const_spec((1, E)),        # out-proj bias
        ],
        out_specs=pl.BlockSpec((1, TL, E), lambda b, l, kv: (b, l, 0)),
        scratch_shapes=[
            pltpu.VMEM((TL, E), jnp.float32),          # qn (layernormed q, residual)
            pltpu.VMEM((nhead, TL, dh), cdt),          # qh (head-split projected q)
            pltpu.VMEM((nhead, TL, 1), jnp.float32),   # m (running max)
            pltpu.VMEM((nhead, TL, 1), jnp.float32),   # l (running denom)
            pltpu.VMEM((nhead, TL, dh), jnp.float32),  # acc (running context)
        ],
        compiler_params=pltpu.CompilerParams(
            dimension_semantics=("parallel", "parallel", "arbitrary"),
            vmem_limit_bytes=vmem_limit),
    )(q, k, v, ln, w_in, b_in, wo_t, bo)

    return jnp.transpose(out, (1, 0, 2)) if seq_first else out


def _reference(query, key, value, params, *, nhead, causal, eps=1e-5):
    """Pure-JAX reference mirroring the PyTorch TransformerBlock (eval mode)."""
    L, N, E = query.shape
    S = key.shape[0]
    dh = E // nhead
    g, b = params["ln_gamma"], params["ln_beta"]

    def ln(x):
        mu = x.mean(-1, keepdims=True)
        var = ((x - mu) ** 2).mean(-1, keepdims=True)
        return (x - mu) / jnp.sqrt(var + eps) * g + b

    qn, kn, vn = ln(query), ln(key), ln(value)
    W, bias = params["in_proj_weight"], params["in_proj_bias"]
    qp = qn @ W[:E].T + bias[:E]
    kp = kn @ W[E:2 * E].T + bias[E:2 * E]
    vp = vn @ W[2 * E:].T + bias[2 * E:]

    def heads(x, T):
        return x.reshape(T, N, nhead, dh).transpose(1, 2, 0, 3)   # (N, H, T, dh)

    qh = heads(qp, L) / math.sqrt(dh)
    kh = heads(kp, S)
    vh = heads(vp, S)
    s = jnp.einsum('nhqd,nhkd->nhqk', qh, kh)
    if causal:
        mask = jnp.triu(jnp.ones((L, S), dtype=bool), 1)
        s = jnp.where(mask[None, None], -jnp.inf, s)
    p = jax.nn.softmax(s, axis=-1)
    ctx = jnp.einsum('nhqk,nhkd->nhqd', p, vh)
    ctx = ctx.transpose(2, 0, 1, 3).reshape(L, N, E)
    attn = ctx @ params["out_proj_weight"].T + params["out_proj_bias"]
    return qn + attn


if __name__ == "__main__":
    d_model = 32
    nhead = 4
    L = S = 8     # sequence length
    N = 2         # batch

    key0 = jax.random.PRNGKey(0)
    ks = jax.random.split(key0, 9)

    # Deterministic synthetic parameters (shapes match nn.MultiheadAttention / LayerNorm).
    params = {
        "ln_gamma": 1.0 + 0.02 * jax.random.normal(ks[0], (d_model,), jnp.float32),
        "ln_beta": 0.02 * jax.random.normal(ks[1], (d_model,), jnp.float32),
        "in_proj_weight": (1.0 / math.sqrt(d_model)) *
                          jax.random.normal(ks[2], (3 * d_model, d_model), jnp.float32),
        "in_proj_bias": 0.01 * jax.random.normal(ks[3], (3 * d_model,), jnp.float32),
        "out_proj_weight": (1.0 / math.sqrt(d_model)) *
                           jax.random.normal(ks[4], (d_model, d_model), jnp.float32),
        "out_proj_bias": 0.01 * jax.random.normal(ks[5], (d_model,), jnp.float32),
    }

    # seq-first (L, N, E) inputs, PyTorch's default MultiheadAttention layout.
    query = jax.random.normal(ks[6], (L, N, d_model), jnp.float32)
    key = jax.random.normal(ks[7], (S, N, d_model), jnp.float32)
    value = jax.random.normal(ks[8], (S, N, d_model), jnp.float32)

    out = transformer_block_forward(query, key, value, params,
                                    nhead=nhead, causal_attn_mask=True)
    jax.block_until_ready(out)
    assert out.shape == (L, N, d_model)

    ref = _reference(query, key, value, params, nhead=nhead, causal=True)
    np.testing.assert_allclose(np.asarray(out), np.asarray(ref), rtol=1e-2, atol=1e-2)

    print("KERNEL_OK")
</pallas_src>

<mosaic_0001>
module attributes {stable_mosaic.version = 11 : i64} {
  func.func @_transformer_block_kernel(%arg0: i32, %arg1: i32, %arg2: i32, %arg3: memref<1x8x32xf32, #tpu.memory_space<vmem>>, %arg4: memref<1x8x32xf32, #tpu.memory_space<vmem>>, %arg5: memref<1x8x32xf32, #tpu.memory_space<vmem>>, %arg6: memref<2x32xf32, #tpu.memory_space<vmem>>, %arg7: memref<3x32x32xf32, #tpu.memory_space<vmem>>, %arg8: memref<3x32xf32, #tpu.memory_space<vmem>>, %arg9: memref<32x32xf32, #tpu.memory_space<vmem>>, %arg10: memref<1x32xf32, #tpu.memory_space<vmem>>, %arg11: memref<1x8x32xf32, #tpu.memory_space<vmem>>, %arg12: memref<8x32xf32, #tpu.memory_space<vmem>>, %arg13: memref<4x8x8xf32, #tpu.memory_space<vmem>>, %arg14: memref<4x8x1xf32, #tpu.memory_space<vmem>>, %arg15: memref<4x8x1xf32, #tpu.memory_space<vmem>>, %arg16: memref<4x8x8xf32, #tpu.memory_space<vmem>>) attributes {dimension_semantics = [#tpu.dimension_semantics<parallel>, #tpu.dimension_semantics<parallel>, #tpu.dimension_semantics<arbitrary>], iteration_bounds = array<i64: 2, 1, 1>, scalar_prefetch = 0 : i64, scratch_operands = 5 : i64, tpu.core_type = #tpu.core_type<tc>, window_params = [{transform_indices = @transform_0, window_bounds = array<i64: 1, 8, 32>}, {transform_indices = @transform_1, window_bounds = array<i64: 1, 8, 32>}, {transform_indices = @transform_2, window_bounds = array<i64: 1, 8, 32>}, {pipeline_mode = #tpu.pipeline_mode<synchronous>, transform_indices = @transform_3, window_bounds = array<i64: 2, 32>}, {pipeline_mode = #tpu.pipeline_mode<synchronous>, transform_indices = @transform_4, window_bounds = array<i64: 3, 32, 32>}, {pipeline_mode = #tpu.pipeline_mode<synchronous>, transform_indices = @transform_5, window_bounds = array<i64: 3, 32>}, {pipeline_mode = #tpu.pipeline_mode<synchronous>, transform_indices = @transform_6, window_bounds = array<i64: 32, 32>}, {pipeline_mode = #tpu.pipeline_mode<synchronous>, transform_indices = @transform_7, window_bounds = array<i64: 1, 32>}, {transform_indices = @transform_8, window_bounds = array<i64: 1, 8, 32>}]} {
    %c0 = arith.constant 0 : index
    %c0_0 = arith.constant 0 : index
    %0 = vector.load %arg6[%c0, %c0_0] : memref<2x32xf32, #tpu.memory_space<vmem>>, vector<1x32xf32>
    %c1 = arith.constant 1 : index
    %c0_1 = arith.constant 0 : index
    %1 = vector.load %arg6[%c1, %c0_1] : memref<2x32xf32, #tpu.memory_space<vmem>>, vector<1x32xf32>
    %c0_i32 = arith.constant 0 : i32
    %2 = arith.cmpi eq, %arg2, %c0_i32 : i32
    %3 = arith.extui %2 : i1 to i32
    %c0_i32_2 = arith.constant 0 : i32
    %4 = arith.cmpi ne, %3, %c0_i32_2 : i32
    scf.if %4 {
      %c0_7 = arith.constant 0 : index
      %c0_8 = arith.constant 0 : index
      %c0_9 = arith.constant 0 : index
      %14 = vector.load %arg3[%c0_7, %c0_8, %c0_9] : memref<1x8x32xf32, #tpu.memory_space<vmem>>, vector<1x8x32xf32>
      %15 = vector.shape_cast %14 : vector<1x8x32xf32> to vector<8x32xf32>
      %cst = arith.constant dense<0.000000e+00> : vector<8xf32>
      %16 = vector.multi_reduction <add>, %15, %cst [1] : vector<8x32xf32> to vector<8xf32>
      %17 = vector.shape_cast %16 : vector<8xf32> to vector<8x1xf32>
      %cst_10 = arith.constant 3.200000e+01 : f32
      %18 = vector.broadcast %cst_10 : f32 to vector<8x1xf32>
      %19 = arith.divf %17, %18 : vector<8x1xf32>
      %20 = vector.broadcast %19 : vector<8x1xf32> to vector<8x32xf32>
      %21 = arith.subf %15, %20 : vector<8x32xf32>
      %22 = arith.mulf %21, %21 : vector<8x32xf32>
      %cst_11 = arith.constant dense<0.000000e+00> : vector<8xf32>
      %23 = vector.multi_reduction <add>, %22, %cst_11 [1] : vector<8x32xf32> to vector<8xf32>
      %24 = vector.shape_cast %23 : vector<8xf32> to vector<8x1xf32>
      %cst_12 = arith.constant 3.200000e+01 : f32
      %25 = vector.broadcast %cst_12 : f32 to vector<8x1xf32>
      %26 = arith.divf %24, %25 : vector<8x1xf32>
      %27 = vector.broadcast %19 : vector<8x1xf32> to vector<8x32xf32>
      %28 = arith.subf %15, %27 : vector<8x32xf32>
      %cst_13 = arith.constant 9.99999974E-6 : f32
      %29 = vector.broadcast %cst_13 : f32 to vector<8x1xf32>
      %30 = arith.addf %26, %29 : vector<8x1xf32>
      %31 = math.rsqrt %30 : vector<8x1xf32>
      %32 = vector.broadcast %31 : vector<8x1xf32> to vector<8x32xf32>
      %33 = arith.mulf %28, %32 : vector<8x32xf32>
      %34 = vector.broadcast %0 : vector<1x32xf32> to vector<8x32xf32>
      %35 = arith.mulf %33, %34 : vector<8x32xf32>
      %36 = vector.broadcast %1 : vector<1x32xf32> to vector<8x32xf32>
      %37 = arith.addf %35, %36 : vector<8x32xf32>
      %c0_14 = arith.constant 0 : index
      %c0_15 = arith.constant 0 : index
      %38 = vector.load %arg12[%c0_14, %c0_15] : memref<8x32xf32, #tpu.memory_space<vmem>>, vector<8x32xf32>
      tpu.vector_store %arg12[%c0_14, %c0_15], %37 {strides = array<i32>} : memref<8x32xf32, #tpu.memory_space<vmem>>, vector<8x32xf32>,
      %c0_16 = arith.constant 0 : index
      %c0_17 = arith.constant 0 : index
      %c0_18 = arith.constant 0 : index
      %39 = vector.load %arg7[%c0_16, %c0_17, %c0_18] : memref<3x32x32xf32, #tpu.memory_space<vmem>>, vector<1x32x32xf32>
      %40 = vector.shape_cast %39 : vector<1x32x32xf32> to vector<32x32xf32>
      %cst_19 = arith.constant dense<0.000000e+00> : vector<8x32xf32>
      %41 = tpu.matmul %37, %40, %cst_19 {dimension_numbers = #tpu.dot_dimension_numbers<[1], [0], [0], [1], [0, 0, 1, 1], [], []>} : vector<8x32xf32>, vector<32x32xf32>, vector<8x32xf32> -> vector<8x32xf32>
      %c0_20 = arith.constant 0 : index
      %c0_21 = arith.constant 0 : index
      %42 = vector.load %arg8[%c0_20, %c0_21] : memref<3x32xf32, #tpu.memory_space<vmem>>, vector<1x32xf32>
      %43 = vector.broadcast %42 : vector<1x32xf32> to vector<8x32xf32>
      %44 = arith.addf %41, %43 : vector<8x32xf32>
      %45 = vector.extract_strided_slice %44 {offsets = [0, 0], sizes = [8, 8], strides = [1, 1]} : vector<8x32xf32> to vector<8x8xf32>
      %46 = vector.extract_strided_slice %44 {offsets = [0, 8], sizes = [8, 8], strides = [1, 1]} : vector<8x32xf32> to vector<8x8xf32>
      %47 = vector.extract_strided_slice %44 {offsets = [0, 16], sizes = [8, 8], strides = [1, 1]} : vector<8x32xf32> to vector<8x8xf32>
      %48 = vector.extract_strided_slice %44 {offsets = [0, 24], sizes = [8, 8], strides = [1, 1]} : vector<8x32xf32> to vector<8x8xf32>
      %49 = vector.shape_cast %45 : vector<8x8xf32> to vector<1x8x8xf32>
      %50 = vector.shape_cast %46 : vector<8x8xf32> to vector<1x8x8xf32>
      %51 = vector.shape_cast %47 : vector<8x8xf32> to vector<1x8x8xf32>
      %52 = vector.shape_cast %48 : vector<8x8xf32> to vector<1x8x8xf32>
      %53 = tpu.concatenate %49, %50, %51, %52 in 0 : vector<1x8x8xf32>, vector<1x8x8xf32>, vector<1x8x8xf32>, vector<1x8x8xf32> -> vector<4x8x8xf32>
      %c0_22 = arith.constant 0 : index
      %c0_23 = arith.constant 0 : index
      %c0_24 = arith.constant 0 : index
      %54 = vector.load %arg13[%c0_22, %c0_23, %c0_24] : memref<4x8x8xf32, #tpu.memory_space<vmem>>, vector<4x8x8xf32>
      tpu.vector_store %arg13[%c0_22, %c0_23, %c0_24], %53 {strides = array<i32>} : memref<4x8x8xf32, #tpu.memory_space<vmem>>, vector<4x8x8xf32>,
      %cst_25 = arith.constant 0xFF800000 : f32
      %55 = vector.broadcast %cst_25 : f32 to vector<4x8x1xf32>
      %c0_26 = arith.constant 0 : index
      %c0_27 = arith.constant 0 : index
      %c0_28 = arith.constant 0 : index
      %56 = vector.load %arg14[%c0_26, %c0_27, %c0_28] : memref<4x8x1xf32, #tpu.memory_space<vmem>>, vector<4x8x1xf32>
      tpu.vector_store %arg14[%c0_26, %c0_27, %c0_28], %55 {strides = array<i32>} : memref<4x8x1xf32, #tpu.memory_space<vmem>>, vector<4x8x1xf32>,
      %cst_29 = arith.constant 0.000000e+00 : f32
      %57 = vector.broadcast %cst_29 : f32 to vector<4x8x1xf32>
      %c0_30 = arith.constant 0 : index
      %c0_31 = arith.constant 0 : index
      %c0_32 = arith.constant 0 : index
      %58 = vector.load %arg15[%c0_30, %c0_31, %c0_32] : memref<4x8x1xf32, #tpu.memory_space<vmem>>, vector<4x8x1xf32>
      tpu.vector_store %arg15[%c0_30, %c0_31, %c0_32], %57 {strides = array<i32>} : memref<4x8x1xf32, #tpu.memory_space<vmem>>, vector<4x8x1xf32>,
      %cst_33 = arith.constant 0.000000e+00 : f32
      %59 = vector.broadcast %cst_33 : f32 to vector<4x8x8xf32>
      %c0_34 = arith.constant 0 : index
      %c0_35 = arith.constant 0 : index
      %c0_36 = arith.constant 0 : index
      %60 = vector.load %arg16[%c0_34, %c0_35, %c0_36] : memref<4x8x8xf32, #tpu.memory_space<vmem>>, vector<4x8x8xf32>
      tpu.vector_store %arg16[%c0_34, %c0_35, %c0_36], %59 {strides = array<i32>} : memref<4x8x8xf32, #tpu.memory_space<vmem>>, vector<4x8x8xf32>,
    } else {
    }
    %c8_i32 = arith.constant 8 : i32
    %5 = arith.muli %arg2, %c8_i32 : i32
    %c8_i32_3 = arith.constant 8 : i32
    %6 = arith.muli %arg1, %c8_i32_3 : i32
    %c7_i32 = arith.constant 7 : i32
    %7 = arith.addi %6, %c7_i32 : i32
    %8 = arith.cmpi sle, %5, %7 : i32
    %9 = arith.extui %8 : i1 to i32
    %c0_i32_4 = arith.constant 0 : i32
    %10 = arith.cmpi ne, %9, %c0_i32_4 : i32
    scf.if %10 {
      %c0_7 = arith.constant 0 : index
      %c0_8 = arith.constant 0 : index
      %c0_9 = arith.constant 0 : index
      %14 = vector.load %arg4[%c0_7, %c0_8, %c0_9] : memref<1x8x32xf32, #tpu.memory_space<vmem>>, vector<1x8x32xf32>
      %15 = vector.shape_cast %14 : vector<1x8x32xf32> to vector<8x32xf32>
      %cst = arith.constant dense<0.000000e+00> : vector<8xf32>
      %16 = vector.multi_reduction <add>, %15, %cst [1] : vector<8x32xf32> to vector<8xf32>
      %17 = vector.shape_cast %16 : vector<8xf32> to vector<8x1xf32>
      %cst_10 = arith.constant 3.200000e+01 : f32
      %18 = vector.broadcast %cst_10 : f32 to vector<8x1xf32>
      %19 = arith.divf %17, %18 : vector<8x1xf32>
      %20 = vector.broadcast %19 : vector<8x1xf32> to vector<8x32xf32>
      %21 = arith.subf %15, %20 : vector<8x32xf32>
      %22 = arith.mulf %21, %21 : vector<8x32xf32>
      %cst_11 = arith.constant dense<0.000000e+00> : vector<8xf32>
      %23 = vector.multi_reduction <add>, %22, %cst_11 [1] : vector<8x32xf32> to vector<8xf32>
      %24 = vector.shape_cast %23 : vector<8xf32> to vector<8x1xf32>
      %cst_12 = arith.constant 3.200000e+01 : f32
      %25 = vector.broadcast %cst_12 : f32 to vector<8x1xf32>
      %26 = arith.divf %24, %25 : vector<8x1xf32>
      %27 = vector.broadcast %19 : vector<8x1xf32> to vector<8x32xf32>
      %28 = arith.subf %15, %27 : vector<8x32xf32>
      %cst_13 = arith.constant 9.99999974E-6 : f32
      %29 = vector.broadcast %cst_13 : f32 to vector<8x1xf32>
      %30 = arith.addf %26, %29 : vector<8x1xf32>
      %31 = math.rsqrt %30 : vector<8x1xf32>
      %32 = vector.broadcast %31 : vector<8x1xf32> to vector<8x32xf32>
      %33 = arith.mulf %28, %32 : vector<8x32xf32>
      %34 = vector.broadcast %0 : vector<1x32xf32> to vector<8x32xf32>
      %35 = arith.mulf %33, %34 : vector<8x32xf32>
      %36 = vector.broadcast %1 : vector<1x32xf32> to vector<8x32xf32>
      %37 = arith.addf %35, %36 : vector<8x32xf32>
      %c0_14 = arith.constant 0 : index
      %c0_15 = arith.constant 0 : index
      %c0_16 = arith.constant 0 : index
      %38 = vector.load %arg5[%c0_14, %c0_15, %c0_16] : memref<1x8x32xf32, #tpu.memory_space<vmem>>, vector<1x8x32xf32>
      %39 = vector.shape_cast %38 : vector<1x8x32xf32> to vector<8x32xf32>
      %cst_17 = arith.constant dense<0.000000e+00> : vector<8xf32>
      %40 = vector.multi_reduction <add>, %39, %cst_17 [1] : vector<8x32xf32> to vector<8xf32>
      %41 = vector.shape_cast %40 : vector<8xf32> to vector<8x1xf32>
      %cst_18 = arith.constant 3.200000e+01 : f32
      %42 = vector.broadcast %cst_18 : f32 to vector<8x1xf32>
      %43 = arith.divf %41, %42 : vector<8x1xf32>
      %44 = vector.broadcast %43 : vector<8x1xf32> to vector<8x32xf32>
      %45 = arith.subf %39, %44 : vector<8x32xf32>
      %46 = arith.mulf %45, %45 : vector<8x32xf32>
      %cst_19 = arith.constant dense<0.000000e+00> : vector<8xf32>
      %47 = vector.multi_reduction <add>, %46, %cst_19 [1] : vector<8x32xf32> to vector<8xf32>
      %48 = vector.shape_cast %47 : vector<8xf32> to vector<8x1xf32>
      %cst_20 = arith.constant 3.200000e+01 : f32
      %49 = vector.broadcast %cst_20 : f32 to vector<8x1xf32>
      %50 = arith.divf %48, %49 : vector<8x1xf32>
      %51 = vector.broadcast %43 : vector<8x1xf32> to vector<8x32xf32>
      %52 = arith.subf %39, %51 : vector<8x32xf32>
      %cst_21 = arith.constant 9.99999974E-6 : f32
      %53 = vector.broadcast %cst_21 : f32 to vector<8x1xf32>
      %54 = arith.addf %50, %53 : vector<8x1xf32>
      %55 = math.rsqrt %54 : vector<8x1xf32>
      %56 = vector.broadcast %55 : vector<8x1xf32> to vector<8x32xf32>
      %57 = arith.mulf %52, %56 : vector<8x32xf32>
      %58 = vector.broadcast %0 : vector<1x32xf32> to vector<8x32xf32>
      %59 = arith.mulf %57, %58 : vector<8x32xf32>
      %60 = vector.broadcast %1 : vector<1x32xf32> to vector<8x32xf32>
      %61 = arith.addf %59, %60 : vector<8x32xf32>
      %c1_22 = arith.constant 1 : index
      %c0_23 = arith.constant 0 : index
      %c0_24 = arith.constant 0 : index
      %62 = vector.load %arg7[%c1_22, %c0_23, %c0_24] : memref<3x32x32xf32, #tpu.memory_space<vmem>>, vector<1x32x32xf32>
      %63 = vector.shape_cast %62 : vector<1x32x32xf32> to vector<32x32xf32>
      %cst_25 = arith.constant dense<0.000000e+00> : vector<8x32xf32>
      %64 = tpu.matmul %37, %63, %cst_25 {dimension_numbers = #tpu.dot_dimension_numbers<[1], [0], [0], [1], [0, 0, 1, 1], [], []>} : vector<8x32xf32>, vector<32x32xf32>, vector<8x32xf32> -> vector<8x32xf32>
      %c1_26 = arith.constant 1 : index
      %c0_27 = arith.constant 0 : index
      %65 = vector.load %arg8[%c1_26, %c0_27] : memref<3x32xf32, #tpu.memory_space<vmem>>, vector<1x32xf32>
      %66 = vector.broadcast %65 : vector<1x32xf32> to vector<8x32xf32>
      %67 = arith.addf %64, %66 : vector<8x32xf32>
      %c2 = arith.constant 2 : index
      %c0_28 = arith.constant 0 : index
      %c0_29 = arith.constant 0 : index
      %68 = vector.load %arg7[%c2, %c0_28, %c0_29] : memref<3x32x32xf32, #tpu.memory_space<vmem>>, vector<1x32x32xf32>
      %69 = vector.shape_cast %68 : vector<1x32x32xf32> to vector<32x32xf32>
      %cst_30 = arith.constant dense<0.000000e+00> : vector<8x32xf32>
      %70 = tpu.matmul %61, %69, %cst_30 {dimension_numbers = #tpu.dot_dimension_numbers<[1], [0], [0], [1], [0, 0, 1, 1], [], []>} : vector<8x32xf32>, vector<32x32xf32>, vector<8x32xf32> -> vector<8x32xf32>
      %c2_31 = arith.constant 2 : index
      %c0_32 = arith.constant 0 : index
      %71 = vector.load %arg8[%c2_31, %c0_32] : memref<3x32xf32, #tpu.memory_space<vmem>>, vector<1x32xf32>
      %72 = vector.broadcast %71 : vector<1x32xf32> to vector<8x32xf32>
      %73 = arith.addf %70, %72 : vector<8x32xf32>
      %74 = vector.extract_strided_slice %67 {offsets = [0, 0], sizes = [8, 8], strides = [1, 1]} : vector<8x32xf32> to vector<8x8xf32>
      %75 = vector.extract_strided_slice %67 {offsets = [0, 8], sizes = [8, 8], strides = [1, 1]} : vector<8x32xf32> to vector<8x8xf32>
      %76 = vector.extract_strided_slice %67 {offsets = [0, 16], sizes = [8, 8], strides = [1, 1]} : vector<8x32xf32> to vector<8x8xf32>
      %77 = vector.extract_strided_slice %67 {offsets = [0, 24], sizes = [8, 8], strides = [1, 1]} : vector<8x32xf32> to vector<8x8xf32>
      %78 = vector.shape_cast %74 : vector<8x8xf32> to vector<1x8x8xf32>
      %79 = vector.shape_cast %75 : vector<8x8xf32> to vector<1x8x8xf32>
      %80 = vector.shape_cast %76 : vector<8x8xf32> to vector<1x8x8xf32>
      %81 = vector.shape_cast %77 : vector<8x8xf32> to vector<1x8x8xf32>
      %82 = tpu.concatenate %78, %79, %80, %81 in 0 : vector<1x8x8xf32>, vector<1x8x8xf32>, vector<1x8x8xf32>, vector<1x8x8xf32> -> vector<4x8x8xf32>
      %83 = vector.extract_strided_slice %73 {offsets = [0, 0], sizes = [8, 8], strides = [1, 1]} : vector<8x32xf32> to vector<8x8xf32>
      %84 = vector.extract_strided_slice %73 {offsets = [0, 8], sizes = [8, 8], strides = [1, 1]} : vector<8x32xf32> to vector<8x8xf32>
      %85 = vector.extract_strided_slice %73 {offsets = [0, 16], sizes = [8, 8], strides = [1, 1]} : vector<8x32xf32> to vector<8x8xf32>
      %86 = vector.extract_strided_slice %73 {offsets = [0, 24], sizes = [8, 8], strides = [1, 1]} : vector<8x32xf32> to vector<8x8xf32>
      %87 = vector.shape_cast %83 : vector<8x8xf32> to vector<1x8x8xf32>
      %88 = vector.shape_cast %84 : vector<8x8xf32> to vector<1x8x8xf32>
      %89 = vector.shape_cast %85 : vector<8x8xf32> to vector<1x8x8xf32>
      %90 = vector.shape_cast %86 : vector<8x8xf32> to vector<1x8x8xf32>
      %91 = tpu.concatenate %87, %88, %89, %90 in 0 : vector<1x8x8xf32>, vector<1x8x8xf32>, vector<1x8x8xf32>, vector<1x8x8xf32> -> vector<4x8x8xf32>
      %c0_33 = arith.constant 0 : index
      %c0_34 = arith.constant 0 : index
      %c0_35 = arith.constant 0 : index
      %92 = vector.load %arg13[%c0_33, %c0_34, %c0_35] : memref<4x8x8xf32, #tpu.memory_space<vmem>>, vector<4x8x8xf32>
      "tpu.trace_start"() <{level = 10 : i32, message = "hqd,hkd->hqk"}> : () -> ()
      %cst_36 = arith.constant dense<0.000000e+00> : vector<4x8x8xf32>
      %93 = tpu.matmul %92, %82, %cst_36 {dimension_numbers = #tpu.dot_dimension_numbers<[2], [2], [1], [1], [0, 0, 0, 1, 1, 1], [0], [0]>} : vector<4x8x8xf32>, vector<4x8x8xf32>, vector<4x8x8xf32> -> vector<4x8x8xf32>
      "tpu.trace_stop"() : () -> ()
      %c8_i32_37 = arith.constant 8 : i32
      %94 = arith.muli %arg1, %c8_i32_37 : i32
      %95 = tpu.iota {dimensions = array<i32: 0>} : vector<8x8xi32>
      %96 = vector.broadcast %94 : i32 to vector<8x8xi32>
      %97 = arith.addi %96, %95 : vector<8x8xi32>
      %c8_i32_38 = arith.constant 8 : i32
      %98 = arith.muli %arg2, %c8_i32_38 : i32
      %99 = tpu.iota {dimensions = array<i32: 1>} : vector<8x8xi32>
      %100 = vector.broadcast %98 : i32 to vector<8x8xi32>
      %101 = arith.addi %100, %99 : vector<8x8xi32>
      %102 = arith.cmpi sgt, %101, %97 : vector<8x8xi32>
      %103 = vector.shape_cast %102 : vector<8x8xi1> to vector<1x8x8xi1>
      %cst_39 = arith.constant -1.000000e+30 : f32
      %104 = vector.shape_cast %103 : vector<1x8x8xi1> to vector<1x8x8xi1>
      %105 = vector.broadcast %104 : vector<1x8x8xi1> to vector<4x8x8xi1>
      %106 = vector.broadcast %cst_39 : f32 to vector<4x8x8xf32>
      %107 = arith.select %105, %106, %93 : vector<4x8x8xi1>, vector<4x8x8xf32>
      %c0_40 = arith.constant 0 : index
      %c0_41 = arith.constant 0 : index
      %c0_42 = arith.constant 0 : index
      %108 = vector.load %arg14[%c0_40, %c0_41, %c0_42] : memref<4x8x1xf32, #tpu.memory_space<vmem>>, vector<4x8x1xf32>
      %cst_43 = arith.constant dense<0xFF800000> : vector<4x8xf32>
      %109 = vector.multi_reduction <maximumf>, %107, %cst_43 [2] : vector<4x8x8xf32> to vector<4x8xf32>
      %110 = vector.shape_cast %109 : vector<4x8xf32> to vector<4x8x1xf32>
      %111 = arith.maximumf %108, %110 : vector<4x8x1xf32>
      %112 = arith.subf %108, %111 : vector<4x8x1xf32>
      %113 = math.exp %112 : vector<4x8x1xf32>
      %114 = vector.broadcast %111 : vector<4x8x1xf32> to vector<4x8x8xf32>
      %115 = arith.subf %107, %114 : vector<4x8x8xf32>
      %116 = math.exp %115 : vector<4x8x8xf32>
      %c0_44 = arith.constant 0 : index
      %c0_45 = arith.constant 0 : index
      %c0_46 = arith.constant 0 : index
      %117 = vector.load %arg15[%c0_44, %c0_45, %c0_46] : memref<4x8x1xf32, #tpu.memory_space<vmem>>, vector<4x8x1xf32>
      %118 = arith.mulf %113, %117 : vector<4x8x1xf32>
      %cst_47 = arith.constant dense<0.000000e+00> : vector<4x8xf32>
      %119 = vector.multi_reduction <add>, %116, %cst_47 [2] : vector<4x8x8xf32> to vector<4x8xf32>
      %120 = vector.shape_cast %119 : vector<4x8xf32> to vector<4x8x1xf32>
      %121 = arith.addf %118, %120 : vector<4x8x1xf32>
      %c0_48 = arith.constant 0 : index
      %c0_49 = arith.constant 0 : index
      %c0_50 = arith.constant 0 : index
      %122 = vector.load %arg15[%c0_48, %c0_49, %c0_50] : memref<4x8x1xf32, #tpu.memory_space<vmem>>, vector<4x8x1xf32>
      tpu.vector_store %arg15[%c0_48, %c0_49, %c0_50], %121 {strides = array<i32>} : memref<4x8x1xf32, #tpu.memory_space<vmem>>, vector<4x8x1xf32>,
      %c0_51 = arith.constant 0 : index
      %c0_52 = arith.constant 0 : index
      %c0_53 = arith.constant 0 : index
      %123 = vector.load %arg16[%c0_51, %c0_52, %c0_53] : memref<4x8x8xf32, #tpu.memory_space<vmem>>, vector<4x8x8xf32>
      %124 = vector.broadcast %113 : vector<4x8x1xf32> to vector<4x8x8xf32>
      %125 = arith.mulf %124, %123 : vector<4x8x8xf32>
      "tpu.trace_start"() <{level = 10 : i32, message = "hqk,hkd->hqd"}> : () -> ()
      %cst_54 = arith.constant dense<0.000000e+00> : vector<4x8x8xf32>
      %126 = tpu.matmul %116, %91, %cst_54 {dimension_numbers = #tpu.dot_dimension_numbers<[2], [1], [1], [2], [0, 0, 0, 1, 1, 2], [0], [0]>} : vector<4x8x8xf32>, vector<4x8x8xf32>, vector<4x8x8xf32> -> vector<4x8x8xf32>
      "tpu.trace_stop"() : () -> ()
      %127 = arith.addf %125, %126 : vector<4x8x8xf32>
      %c0_55 = arith.constant 0 : index
      %c0_56 = arith.constant 0 : index
      %c0_57 = arith.constant 0 : index
      %128 = vector.load %arg16[%c0_55, %c0_56, %c0_57] : memref<4x8x8xf32, #tpu.memory_space<vmem>>, vector<4x8x8xf32>
      tpu.vector_store %arg16[%c0_55, %c0_56, %c0_57], %127 {strides = array<i32>} : memref<4x8x8xf32, #tpu.memory_space<vmem>>, vector<4x8x8xf32>,
      %c0_58 = arith.constant 0 : index
      %c0_59 = arith.constant 0 : index
      %c0_60 = arith.constant 0 : index
      %129 = vector.load %arg14[%c0_58, %c0_59, %c0_60] : memref<4x8x1xf32, #tpu.memory_space<vmem>>, vector<4x8x1xf32>
      tpu.vector_store %arg14[%c0_58, %c0_59, %c0_60], %111 {strides = array<i32>} : memref<4x8x1xf32, #tpu.memory_space<vmem>>, vector<4x8x1xf32>,
    } else {
    }
    %c0_i32_5 = arith.constant 0 : i32
    %11 = arith.cmpi eq, %arg2, %c0_i32_5 : i32
    %12 = arith.extui %11 : i1 to i32
    %c0_i32_6 = arith.constant 0 : i32
    %13 = arith.cmpi ne, %12, %c0_i32_6 : i32
    scf.if %13 {
      %c0_7 = arith.constant 0 : index
      %c0_8 = arith.constant 0 : index
      %c0_9 = arith.constant 0 : index
      %14 = vector.load %arg16[%c0_7, %c0_8, %c0_9] : memref<4x8x8xf32, #tpu.memory_space<vmem>>, vector<4x8x8xf32>
      %c0_10 = arith.constant 0 : index
      %c0_11 = arith.constant 0 : index
      %c0_12 = arith.constant 0 : index
      %15 = vector.load %arg15[%c0_10, %c0_11, %c0_12] : memref<4x8x1xf32, #tpu.memory_space<vmem>>, vector<4x8x1xf32>
      %16 = tpu.reciprocal %15 {approx = true} : vector<4x8x1xf32> -> vector<4x8x1xf32>
      %17 = vector.broadcast %16 : vector<4x8x1xf32> to vector<4x8x8xf32>
      %18 = arith.mulf %14, %17 : vector<4x8x8xf32>
      %19 = vector.extract_strided_slice %18 {offsets = [0, 0, 0], sizes = [1, 8, 8], strides = [1, 1, 1]} : vector<4x8x8xf32> to vector<1x8x8xf32>
      %20 = vector.shape_cast %19 : vector<1x8x8xf32> to vector<8x8xf32>
      %21 = vector.extract_strided_slice %18 {offsets = [1, 0, 0], sizes = [1, 8, 8], strides = [1, 1, 1]} : vector<4x8x8xf32> to vector<1x8x8xf32>
      %22 = vector.shape_cast %21 : vector<1x8x8xf32> to vector<8x8xf32>
      %23 = vector.extract_strided_slice %18 {offsets = [2, 0, 0], sizes = [1, 8, 8], strides = [1, 1, 1]} : vector<4x8x8xf32> to vector<1x8x8xf32>
      %24 = vector.shape_cast %23 : vector<1x8x8xf32> to vector<8x8xf32>
      %25 = vector.extract_strided_slice %18 {offsets = [3, 0, 0], sizes = [1, 8, 8], strides = [1, 1, 1]} : vector<4x8x8xf32> to vector<1x8x8xf32>
      %26 = vector.shape_cast %25 : vector<1x8x8xf32> to vector<8x8xf32>
      %27 = tpu.concatenate %20, %22, %24, %26 in 1 : vector<8x8xf32>, vector<8x8xf32>, vector<8x8xf32>, vector<8x8xf32> -> vector<8x32xf32>
      %c0_13 = arith.constant 0 : index
      %c0_14 = arith.constant 0 : index
      %28 = vector.load %arg9[%c0_13, %c0_14] : memref<32x32xf32, #tpu.memory_space<vmem>>, vector<32x32xf32>
      %cst = arith.constant dense<0.000000e+00> : vector<8x32xf32>
      %29 = tpu.matmul %27, %28, %cst {dimension_numbers = #tpu.dot_dimension_numbers<[1], [0], [0], [1], [0, 0, 1, 1], [], []>} : vector<8x32xf32>, vector<32x32xf32>, vector<8x32xf32> -> vector<8x32xf32>
      %c0_15 = arith.constant 0 : index
      %c0_16 = arith.constant 0 : index
      %30 = vector.load %arg10[%c0_15, %c0_16] : memref<1x32xf32, #tpu.memory_space<vmem>>, vector<1x32xf32>
      %31 = vector.broadcast %30 : vector<1x32xf32> to vector<8x32xf32>
      %32 = arith.addf %29, %31 : vector<8x32xf32>
      %c0_17 = arith.constant 0 : index
      %c0_18 = arith.constant 0 : index
      %33 = vector.load %arg12[%c0_17, %c0_18] : memref<8x32xf32, #tpu.memory_space<vmem>>, vector<8x32xf32>
      %34 = arith.addf %33, %32 : vector<8x32xf32>
      %c0_19 = arith.constant 0 : index
      %c0_20 = arith.constant 0 : index
      %c0_21 = arith.constant 0 : index
      %35 = vector.load %arg11[%c0_19, %c0_20, %c0_21] : memref<1x8x32xf32, #tpu.memory_space<vmem>>, vector<1x8x32xf32>
      %36 = vector.shape_cast %35 : vector<1x8x32xf32> to vector<8x32xf32>
      %37 = vector.shape_cast %34 : vector<8x32xf32> to vector<1x8x32xf32>
      tpu.vector_store %arg11[%c0_19, %c0_20, %c0_21], %37 {strides = array<i32>} : memref<1x8x32xf32, #tpu.memory_space<vmem>>, vector<1x8x32xf32>,
    } else {
    }
    return
  }
  func.func @transform_0(%arg0: i32, %arg1: i32, %arg2: i32) -> (i32, i32, i32) {
    %c0_i32 = arith.constant 0 : i32
    %c0_i32_0 = arith.constant 0 : i32
    return %arg0, %arg1, %c0_i32 : i32, i32, i32
  }
  func.func @transform_1(%arg0: i32, %arg1: i32, %arg2: i32) -> (i32, i32, i32) {
    %c0_i32 = arith.constant 0 : i32
    %c0_i32_0 = arith.constant 0 : i32
    return %arg0, %arg2, %c0_i32 : i32, i32, i32
  }
  func.func @transform_2(%arg0: i32, %arg1: i32, %arg2: i32) -> (i32, i32, i32) {
    %c0_i32 = arith.constant 0 : i32
    %c0_i32_0 = arith.constant 0 : i32
    return %arg0, %arg2, %c0_i32 : i32, i32, i32
  }
  func.func @transform_3(%arg0: i32, %arg1: i32, %arg2: i32) -> (i32, i32) {
    %c0_i32 = arith.constant 0 : i32
    %c0_i32_0 = arith.constant 0 : i32
    %c0_i32_1 = arith.constant 0 : i32
    return %c0_i32, %c0_i32_0 : i32, i32
  }
  func.func @transform_4(%arg0: i32, %arg1: i32, %arg2: i32) -> (i32, i32, i32) {
    %c0_i32 = arith.constant 0 : i32
    %c0_i32_0 = arith.constant 0 : i32
    %c0_i32_1 = arith.constant 0 : i32
    %c0_i32_2 = arith.constant 0 : i32
    return %c0_i32, %c0_i32_0, %c0_i32_1 : i32, i32, i32
  }
  func.func @transform_5(%arg0: i32, %arg1: i32, %arg2: i32) -> (i32, i32) {
    %c0_i32 = arith.constant 0 : i32
    %c0_i32_0 = arith.constant 0 : i32
    %c0_i32_1 = arith.constant 0 : i32
    return %c0_i32, %c0_i32_0 : i32, i32
  }
  func.func @transform_6(%arg0: i32, %arg1: i32, %arg2: i32) -> (i32, i32) {
    %c0_i32 = arith.constant 0 : i32
    %c0_i32_0 = arith.constant 0 : i32
    %c0_i32_1 = arith.constant 0 : i32
    return %c0_i32, %c0_i32_0 : i32, i32
  }
  func.func @transform_7(%arg0: i32, %arg1: i32, %arg2: i32) -> (i32, i32) {
    %c0_i32 = arith.constant 0 : i32
    %c0_i32_0 = arith.constant 0 : i32
    %c0_i32_1 = arith.constant 0 : i32
    return %c0_i32, %c0_i32_0 : i32, i32
  }
  func.func @transform_8(%arg0: i32, %arg1: i32, %arg2: i32) -> (i32, i32, i32) {
    %c0_i32 = arith.constant 0 : i32
    %c0_i32_0 = arith.constant 0 : i32
    return %arg0, %arg1, %c0_i32 : i32, i32, i32
  }
}

</mosaic_0001>

<llo_original>
// kernel: tpu_custom_call.1
$region0: #{tpu_custom_call.1}
  #allocation0 [shape = 'u32[]', space=smem, size = 0x4, offset = 0x4, fixed_abs, tag = 'smem constant byte address 0x4 - core index']
  #allocation1 [shape = 'u32[144,128]{1,0:T(1,128)}', space=vmem, size = 0x12000, scoped, tag = 'internal scratch']
  #allocation2 [shape = 'f32[8,32]{1,0:T(8,128)}', space=vmem, size = 0x1000, scoped, tag = 'scratch operand']
  #allocation3 [shape = 'f32[4,8,8]{2,1,0:T(8,128)}', space=vmem, size = 0x4000, scoped, tag = 'scratch operand']
  #allocation4 [shape = 'f32[4,8,1]{2,1,0:T(8,128)}', space=vmem, size = 0x4000, scoped, tag = 'scratch operand']
  #allocation5 [shape = 'f32[4,8,1]{2,1,0:T(8,128)}', space=vmem, size = 0x4000, scoped, tag = 'scratch operand']
  #allocation6 [shape = 'f32[4,8,8]{2,1,0:T(8,128)}', space=vmem, size = 0x4000, scoped, tag = 'scratch operand']
  %s0 = inlined_call_operand.hbm [shape: f32[2,8,32], index: 0, kind: input, shape index: {}]
  %s1 = inlined_call_operand.hbm [shape: f32[2,8,32], index: 1, kind: input, shape index: {}]
  %s2 = inlined_call_operand.hbm [shape: f32[2,8,32], index: 2, kind: input, shape index: {}]
  %s3 = inlined_call_operand.vmem [shape: f32[2,32], index: 3, kind: input, shape index: {}]
  %s4 = inlined_call_operand.hbm [shape: f32[3,32,32], index: 4, kind: input, shape index: {}]
  %s5 = inlined_call_operand.vmem [shape: f32[3,32], index: 5, kind: input, shape index: {}]
  %s6 = inlined_call_operand.hbm [shape: f32[32,32], index: 6, kind: input, shape index: {}]
  %s7 = inlined_call_operand.vmem [shape: f32[1,32], index: 7, kind: input, shape index: {}]
  %s8 = inlined_call_operand.hbm [shape: f32[2,8,32], index: 8, kind: output, shape index: {}]
  %s9 = sld [smem:[#allocation0]]
  $region97: #{tpu_custom_call.1} parent=0
    _
  %s11 = ssub.s32 1, %s9
  %s12 = scalar_select 0, %s11, %s9
  $region1: #{tpu_custom_call.1} parent=0
    #allocation7 [shape = 'u8[8192]{0}', space=vmem, size = 0x2000, scoped, tag = 'input window, operand 0']
    #allocation8 [shape = 's32[2]{0}', space=sflag, size = 0x8, scoped, tag = 'scoped memory for tpu_custom_call.1']
    #allocation9 [shape = 's32[2]{0}', space=sflag, size = 0x8, scoped, tag = 'scoped memory for tpu_custom_call.1']
    #allocation10 [shape = 'u8[8192]{0}', space=vmem, size = 0x2000, scoped, tag = 'input window, operand 1']
    #allocation11 [shape = 's32[2]{0}', space=sflag, size = 0x8, scoped, tag = 'scoped memory for tpu_custom_call.1']
    #allocation12 [shape = 'u8[8192]{0}', space=vmem, size = 0x2000, scoped, tag = 'input window, operand 2']
    #allocation13 [shape = 'u8[49152]{0}', space=vmem, size = 0xc000, scoped, tag = 'input window, operand 4, single buffered']
    #allocation14 [shape = 's32[1]{0}', space=sflag, size = 0x4, scoped, tag = 'scoped memory for tpu_custom_call.1']
    #allocation15 [shape = 'u8[16384]{0}', space=vmem, size = 0x4000, scoped, tag = 'input window, operand 6, single buffered']
    #allocation16 [shape = 'u8[8192]{0}', space=vmem, size = 0x2000, scoped, tag = 'output window, operand 0']
    %13 = vsyncpa [#allocation8], 0
    %s14 = scalar_lea.sflag [#allocation8], 1
    %15 = vsyncpa %s14, 0
    %16 = vsyncpa [#allocation11], 0
    %s17 = scalar_lea.sflag [#allocation11], 1
    %18 = vsyncpa %s17, 0
    %19 = vsyncpa [#allocation14], 0
    %20 = vsyncpa [#allocation9], 0
    %s21 = scalar_lea.sflag [#allocation9], 1
    %22 = vsyncpa %s21, 0
    loop: start=0, step=1, limit=4
    $region2: #{tpu_custom_call.1} parent=1 // loop_pre_header
      _
    $region3: #{tpu_custom_call.1} parent=1 // loop_header
      %s24 = sphi 0, %s28
      %p25 = scmp.ge.s32.totalorder %s24, 4
      %s31 = sphi 0, %s50
      %s32 = sphi 0, %s46
      %s33 = sphi 0, %s42
      %s34 = sphi 0, %s31
      %s35 = sphi 0, %s32
      %s36 = sphi 0, %s33
      %s37 = sphi 0, %s34
      %s38 = sphi 0, %s35
      %s39 = sphi 0, %s36
      %s55 = sphi 0, %s57
      %s58 = sphi 0, %s55
      %s59 = sphi 0, %s58
      %s75 = sphi 0, %s59
      %s83 = sphi 0, %s85
      %s86 = sphi 0, %s83
      %s87 = sphi 0, %s86
      %s103 = sphi 0, %s87
      %s111 = sphi 0, %s113
      %s114 = sphi 0, %s111
      %s115 = sphi 0, %s114
      %s131 = sphi 0, %s115
      %s135 = sphi 0, %s135
      %s137 = sphi 0, %s135
      %s138 = sphi 0, %s137
      %s152 = sphi 0, %s138
      %s156 = sphi 0, %s156
      %s158 = sphi 0, %s156
      %s159 = sphi 0, %s158
      %s173 = sphi 0, %s159
      %s177 = sphi 0, %s177
      %s179 = sphi 0, %s177
      %s180 = sphi 0, %s179
      %s194 = sphi 0, %s180
      %s198 = sphi 0, %s198
      %s200 = sphi 0, %s198
      %s201 = sphi 0, %s200
      %s215 = sphi 0, %s201
      %s219 = sphi 0, %s219
      %s221 = sphi 0, %s219
      %s222 = sphi 0, %s221
      %s236 = sphi 0, %s222
      %s244 = sphi 0, %s246
      %s247 = sphi 0, %s244
      %s248 = sphi 0, %s247
      %s264 = sphi 0, %s248
    $region4: #{tpu_custom_call.1} parent=1 // loop_header_branch
      %27 = sbr.rel (%p25) target = $region8
    $region5: #{tpu_custom_call.1} parent=1 // loop_body
      %s29 = ssub.s32 %s24, 1
      %s30 = ssub.s32 %s24, 2
      %s40 = sadd.s32 1, %s33
      %p41 = scmp.ge.s32.totalorder %s40, 1
      %s42 = scalar_select %p41, 0, %s40
      %s43 = sadd.s32 1, %s32
      %s44 = scalar_select %p41, %s43, %s32
      %p45 = scmp.ge.s32.totalorder %s44, 1
      %s46 = scalar_select %p45, 0, %s44
      %s47 = sadd.s32 1, %s31
      %s48 = scalar_select %p45, %s47, %s31
      %p49 = scmp.ge.s32.totalorder %s48, 2
      %s50 = scalar_select %p49, 0, %s48
      %s51 = ssub.s32 %s31, %s50
      %s52 = ssub.s32 %s32, %s46
      %s53 = sor.u32 %s51, %s52
      %p54 = scmp.eq.s32.totalorder %s53, 0
      %s56 = sadd.s32 %s55, 1
      %s57 = scalar_select %p54, %s55, %s56
      %p60 = pneg %p54
      %p61 = scmp.eq.s32.totalorder %s24, 1
      %p62 = por %p60, %p61
      %p63 = scmp.ne.s32.totalorder %s55, %s58
      %p64 = scmp.eq.s32.totalorder %s24, 0
      %p65 = por %p63, %p64
      %p66 = scmp.ne.s32.totalorder %s55, %s58
      %p67 = scmp.eq.s32.totalorder %s29, 1
      %p68 = por %p66, %p67
      %p69 = scmp.ne.s32.totalorder %s58, %s59
      %p70 = scmp.eq.s32.totalorder %s29, 0
      %p71 = por %p69, %p70
      %p72 = scmp.ne.s32.totalorder %s58, %s59
      %p73 = scmp.eq.s32.totalorder %s30, 1
      %p74 = por %p72, %p73
      %p76 = scmp.ne.s32.totalorder %s59, %s75
      %p77 = scmp.eq.s32.totalorder %s30, 0
      %p78 = por %p76, %p77
      %s79 = ssub.s32 %s31, %s50
      %s80 = ssub.s32 %s33, %s42
      %s81 = sor.u32 %s79, %s80
      %p82 = scmp.eq.s32.totalorder %s81, 0
      %s84 = sadd.s32 %s83, 1
      %s85 = scalar_select %p82, %s83, %s84
      %p88 = pneg %p82
      %p89 = scmp.eq.s32.totalorder %s24, 1
      %p90 = por %p88, %p89
      %p91 = scmp.ne.s32.totalorder %s83, %s86
      %p92 = scmp.eq.s32.totalorder %s24, 0
      %p93 = por %p91, %p92
      %p94 = scmp.ne.s32.totalorder %s83, %s86
      %p95 = scmp.eq.s32.totalorder %s29, 1
      %p96 = por %p94, %p95
      %p97 = scmp.ne.s32.totalorder %s86, %s87
      %p98 = scmp.eq.s32.totalorder %s29, 0
      %p99 = por %p97, %p98
      %p100 = scmp.ne.s32.totalorder %s86, %s87
      %p101 = scmp.eq.s32.totalorder %s30, 1
      %p102 = por %p100, %p101
      %p104 = scmp.ne.s32.totalorder %s87, %s103
      %p105 = scmp.eq.s32.totalorder %s30, 0
      %p106 = por %p104, %p105
      %s107 = ssub.s32 %s31, %s50
      %s108 = ssub.s32 %s33, %s42
      %s109 = sor.u32 %s107, %s108
      %p110 = scmp.eq.s32.totalorder %s109, 0
      %s112 = sadd.s32 %s111, 1
      %s113 = scalar_select %p110, %s111, %s112
      %p116 = pneg %p110
      %p117 = scmp.eq.s32.totalorder %s24, 1
      %p118 = por %p116, %p117
      %p119 = scmp.ne.s32.totalorder %s111, %s114
      %p120 = scmp.eq.s32.totalorder %s24, 0
      %p121 = por %p119, %p120
      %p122 = scmp.ne.s32.totalorder %s111, %s114
      %p123 = scmp.eq.s32.totalorder %s29, 1
      %p124 = por %p122, %p123
      %p125 = scmp.ne.s32.totalorder %s114, %s115
      %p126 = scmp.eq.s32.totalorder %s29, 0
      %p127 = por %p125, %p126
      %p128 = scmp.ne.s32.totalorder %s114, %s115
      %p129 = scmp.eq.s32.totalorder %s30, 1
      %p130 = por %p128, %p129
      %p132 = scmp.ne.s32.totalorder %s115, %s131
      %p133 = scmp.eq.s32.totalorder %s30, 0
      %p134 = por %p132, %p133
      %s136 = sadd.s32 %s135, 1
      %p139 = scmp.eq.s32.totalorder %s24, 1
      %p140 = scmp.ne.s32.totalorder %s135, %s137
      %p141 = scmp.eq.s32.totalorder %s24, 0
      %p142 = por %p140, %p141
      %p143 = scmp.ne.s32.totalorder %s135, %s137
      %p144 = scmp.eq.s32.totalorder %s29, 1
      %p145 = por %p143, %p144
      %p146 = scmp.ne.s32.totalorder %s137, %s138
      %p147 = scmp.eq.s32.totalorder %s29, 0
      %p148 = por %p146, %p147
      %p149 = scmp.ne.s32.totalorder %s137, %s138
      %p150 = scmp.eq.s32.totalorder %s30, 1
      %p151 = por %p149, %p150
      %p153 = scmp.ne.s32.totalorder %s138, %s152
      %p154 = scmp.eq.s32.totalorder %s30, 0
      %p155 = por %p153, %p154
      %s157 = sadd.s32 %s156, 1
      %p160 = scmp.eq.s32.totalorder %s24, 1
      %p161 = scmp.ne.s32.totalorder %s156, %s158
      %p162 = scmp.eq.s32.totalorder %s24, 0
      %p163 = por %p161, %p162
      %p164 = scmp.ne.s32.totalorder %s156, %s158
      %p165 = scmp.eq.s32.totalorder %s29, 1
      %p166 = por %p164, %p165
      %p167 = scmp.ne.s32.totalorder %s158, %s159
      %p168 = scmp.eq.s32.totalorder %s29, 0
      %p169 = por %p167, %p168
      %p170 = scmp.ne.s32.totalorder %s158, %s159
      %p171 = scmp.eq.s32.totalorder %s30, 1
      %p172 = por %p170, %p171
      %p174 = scmp.ne.s32.totalorder %s159, %s173
      %p175 = scmp.eq.s32.totalorder %s30, 0
      %p176 = por %p174, %p175
      %s178 = sadd.s32 %s177, 1
      %p181 = scmp.eq.s32.totalorder %s24, 1
      %p182 = scmp.ne.s32.totalorder %s177, %s179
      %p183 = scmp.eq.s32.totalorder %s24, 0
      %p184 = por %p182, %p183
      %p185 = scmp.ne.s32.totalorder %s177, %s179
      %p186 = scmp.eq.s32.totalorder %s29, 1
      %p187 = por %p185, %p186
      %p188 = scmp.ne.s32.totalorder %s179, %s180
      %p189 = scmp.eq.s32.totalorder %s29, 0
      %p190 = por %p188, %p189
      %p191 = scmp.ne.s32.totalorder %s179, %s180
      %p192 = scmp.eq.s32.totalorder %s30, 1
      %p193 = por %p191, %p192
      %p195 = scmp.ne.s32.totalorder %s180, %s194
      %p196 = scmp.eq.s32.totalorder %s30, 0
      %p197 = por %p195, %p196
      %s199 = sadd.s32 %s198, 1
      %p202 = scmp.eq.s32.totalorder %s24, 1
      %p203 = scmp.ne.s32.totalorder %s198, %s200
      %p204 = scmp.eq.s32.totalorder %s24, 0
      %p205 = por %p203, %p204
      %p206 = scmp.ne.s32.totalorder %s198, %s200
      %p207 = scmp.eq.s32.totalorder %s29, 1
      %p208 = por %p206, %p207
      %p209 = scmp.ne.s32.totalorder %s200, %s201
      %p210 = scmp.eq.s32.totalorder %s29, 0
      %p211 = por %p209, %p210
      %p212 = scmp.ne.s32.totalorder %s200, %s201
      %p213 = scmp.eq.s32.totalorder %s30, 1
      %p214 = por %p212, %p213
      %p216 = scmp.ne.s32.totalorder %s201, %s215
      %p217 = scmp.eq.s32.totalorder %s30, 0
      %p218 = por %p216, %p217
      %s220 = sadd.s32 %s219, 1
      %p223 = scmp.eq.s32.totalorder %s24, 1
      %p224 = scmp.ne.s32.totalorder %s219, %s221
      %p225 = scmp.eq.s32.totalorder %s24, 0
      %p226 = por %p224, %p225
      %p227 = scmp.ne.s32.totalorder %s219, %s221
      %p228 = scmp.eq.s32.totalorder %s29, 1
      %p229 = por %p227, %p228
      %p230 = scmp.ne.s32.totalorder %s221, %s222
      %p231 = scmp.eq.s32.totalorder %s29, 0
      %p232 = por %p230, %p231
      %p233 = scmp.ne.s32.totalorder %s221, %s222
      %p234 = scmp.eq.s32.totalorder %s30, 1
      %p235 = por %p233, %p234
      %p237 = scmp.ne.s32.totalorder %s222, %s236
      %p238 = scmp.eq.s32.totalorder %s30, 0
      %p239 = por %p237, %p238
      %s240 = ssub.s32 %s31, %s50
      %s241 = ssub.s32 %s32, %s46
      %s242 = sor.u32 %s240, %s241
      %p243 = scmp.eq.s32.totalorder %s242, 0
      %s245 = sadd.s32 %s244, 1
      %s246 = scalar_select %p243, %s244, %s245
      %p249 = pneg %p243
      %p250 = scmp.eq.s32.totalorder %s24, 1
      %p251 = por %p249, %p250
      %p252 = scmp.ne.s32.totalorder %s244, %s247
      %p253 = scmp.eq.s32.totalorder %s24, 0
      %p254 = por %p252, %p253
      %p255 = scmp.ne.s32.totalorder %s244, %s247
      %p256 = scmp.eq.s32.totalorder %s29, 1
      %p257 = por %p255, %p256
      %p258 = scmp.ne.s32.totalorder %s247, %s248
      %p259 = scmp.eq.s32.totalorder %s29, 0
      %p260 = por %p258, %p259
      %p261 = scmp.ne.s32.totalorder %s247, %s248
      %p262 = scmp.eq.s32.totalorder %s30, 1
      %p263 = por %p261, %p262
      %p265 = scmp.ne.s32.totalorder %s248, %s264
      %p266 = scmp.eq.s32.totalorder %s30, 0
      %p267 = por %p265, %p266
      %p268 = scmp.le.s32.totalorder 1, %s24
      %p269 = scmp.lt.s32.totalorder %s24, 3
      %p270 = pnand %p268, %p269
      %p271 = pneg %p270
      // Predicated region
      $region9: #{tpu_custom_call.1} parent=5 // pred_check
        _
      $region10: #{tpu_custom_call.1} parent=5 // pred_check_branch
        %273 = sbr.rel (%p270) target = $region12
      $region11: #{tpu_custom_call.1} parent=5 // pred_region
        %s274 = ssub.s32 %s24, 1
        // Predicated region
        $region13: #{tpu_custom_call.1} parent=11 // pred_check
          %p275 = pneg %p148
        $region14: #{tpu_custom_call.1} parent=11 // pred_check_branch
          %277 = sbr.rel (%p275) target = $region16
        $region15: #{tpu_custom_call.1} parent=11 // pred_region
          _
        $region16: #{tpu_custom_call.1} parent=11 // pred_fallthru
          _
        // Predicated region
        $region17: #{tpu_custom_call.1} parent=11 // pred_check
          %p278 = pneg %p169
        $region18: #{tpu_custom_call.1} parent=11 // pred_check_branch
          %280 = sbr.rel (%p278) target = $region20
        $region19: #{tpu_custom_call.1} parent=11 // pred_region
          %s282 = ssub.s32 1536, 1536
          %283 = vsyncadd [#allocation14], %s282
          %s284 = sshll.u32 [#allocation13], 4
          %s285 = int_to_ptr.vmem [resolvable:$true] %s284
          %290 = dma.hbm_to_vmem [thread:$0]  %s4, 1536, %s285, [#allocation14], 128, 128, 8
        $region20: #{tpu_custom_call.1} parent=11 // pred_fallthru
          _
        // Predicated region
        $region21: #{tpu_custom_call.1} parent=11 // pred_check
          %p291 = pneg %p190
        $region22: #{tpu_custom_call.1} parent=11 // pred_check_branch
          %293 = sbr.rel (%p291) target = $region24
        $region23: #{tpu_custom_call.1} parent=11 // pred_region
          _
        $region24: #{tpu_custom_call.1} parent=11 // pred_fallthru
          _
        // Predicated region
        $region25: #{tpu_custom_call.1} parent=11 // pred_check
          %p294 = pneg %p211
        $region26: #{tpu_custom_call.1} parent=11 // pred_check_branch
          %296 = sbr.rel (%p294) target = $region28
        $region27: #{tpu_custom_call.1} parent=11 // pred_region
          %s298 = ssub.s32 512, 512
          %299 = vsyncadd [#allocation14], %s298
          %s300 = sshll.u32 [#allocation15], 4
          %s301 = int_to_ptr.vmem [resolvable:$true] %s300
          %306 = dma.hbm_to_vmem [thread:$0]  %s6, 512, %s301, [#allocation14], 128, 128, 8
        $region28: #{tpu_custom_call.1} parent=11 // pred_fallthru
          _
        // Predicated region
        $region29: #{tpu_custom_call.1} parent=11 // pred_check
          %p307 = pneg %p232
        $region30: #{tpu_custom_call.1} parent=11 // pred_check_branch
          %309 = sbr.rel (%p307) target = $region32
        $region31: #{tpu_custom_call.1} parent=11 // pred_region
          _
        $region32: #{tpu_custom_call.1} parent=11 // pred_fallthru
          _
      $region12: #{tpu_custom_call.1} parent=5 // pred_fallthru
        _
      %p310 = scmp.lt.s32.totalorder %s24, 2
      // Predicated region
      $region33: #{tpu_custom_call.1} parent=5 // pred_check
        %p311 = pneg %p310
      $region34: #{tpu_custom_call.1} parent=5 // pred_check_branch
        %313 = sbr.rel (%p311) target = $region36
      $region35: #{tpu_custom_call.1} parent=5 // pred_region
        // Predicated region
        $region37: #{tpu_custom_call.1} parent=35 // pred_check
          %p314 = pneg %p65
        $region38: #{tpu_custom_call.1} parent=35 // pred_check_branch
          %316 = sbr.rel (%p314) target = $region40
        $region39: #{tpu_custom_call.1} parent=35 // pred_region
          %s317 = sand.u32 %s55, 1
          %s318 = scalar_lea.sflag [#allocation8], %s317
          %s319 = sand.u32 %s55, 1
          %s320 = smul.addr %s319, 8
          %s321 = scalar_lea.vmem [#allocation7], %s320
          %s323 = ssub.s32 128, 128
          %324 = vsyncadd %s318, %s323
          %s325 = sadd.s32 %s32, %s31
          %s326 = smul.addr %s325, 128
          %s327 = scalar_lea.hbm %s0, %s326
          %s329 = sshll.u32 %s321, 4
          %s330 = int_to_ptr.vmem [resolvable:$true] %s329
          %332 = dma.hbm_to_vmem [thread:$0]  %s327, 128, %s330, %s318
        $region40: #{tpu_custom_call.1} parent=35 // pred_fallthru
          _
        // Predicated region
        $region41: #{tpu_custom_call.1} parent=35 // pred_check
          %p333 = pneg %p93
        $region42: #{tpu_custom_call.1} parent=35 // pred_check_branch
          %335 = sbr.rel (%p333) target = $region44
        $region43: #{tpu_custom_call.1} parent=35 // pred_region
          %s336 = sand.u32 %s24, 1
          %s337 = scalar_lea.sflag [#allocation11], %s336
          %s338 = sand.u32 %s83, 1
          %s339 = smul.addr %s338, 8
          %s340 = scalar_lea.vmem [#allocation10], %s339
          %s342 = ssub.s32 128, 128
          %343 = vsyncadd %s337, %s342
          %s344 = sadd.s32 %s33, %s31
          %s345 = smul.addr %s344, 128
          %s346 = scalar_lea.hbm %s1, %s345
          %s348 = sshll.u32 %s340, 4
          %s349 = int_to_ptr.vmem [resolvable:$true] %s348
          %351 = dma.hbm_to_vmem [thread:$0]  %s346, 128, %s349, %s337
        $region44: #{tpu_custom_call.1} parent=35 // pred_fallthru
          _
        // Predicated region
        $region45: #{tpu_custom_call.1} parent=35 // pred_check
          %p352 = pneg %p121
        $region46: #{tpu_custom_call.1} parent=35 // pred_check_branch
          %354 = sbr.rel (%p352) target = $region48
        $region47: #{tpu_custom_call.1} parent=35 // pred_region
          %s355 = sand.u32 %s24, 1
          %s356 = scalar_lea.sflag [#allocation11], %s355
          %s357 = sand.u32 %s111, 1
          %s358 = smul.addr %s357, 8
          %s359 = scalar_lea.vmem [#allocation12], %s358
          %s361 = ssub.s32 128, 128
          %362 = vsyncadd %s356, %s361
          %s363 = sadd.s32 %s33, %s31
          %s364 = smul.addr %s363, 128
          %s365 = scalar_lea.hbm %s2, %s364
          %s367 = sshll.u32 %s359, 4
          %s368 = int_to_ptr.vmem [resolvable:$true] %s367
          %370 = dma.hbm_to_vmem [thread:$0]  %s365, 128, %s368, %s356
        $region48: #{tpu_custom_call.1} parent=35 // pred_fallthru
          _
      $region36: #{tpu_custom_call.1} parent=5 // pred_fallthru
        _
      %p371 = scmp.le.s32.totalorder 1, %s24
      %p372 = scmp.lt.s32.totalorder %s24, 3
      %p373 = pnand %p371, %p372
      %p374 = pneg %p373
      // Predicated region
      $region49: #{tpu_custom_call.1} parent=5 // pred_check
        _
      $region50: #{tpu_custom_call.1} parent=5 // pred_check_branch
        %376 = sbr.rel (%p373) target = $region52
      $region51: #{tpu_custom_call.1} parent=5 // pred_region
        %s377 = ssub.s32 %s24, 1
        %s378 = sand.u32 %s58, 1
        %s379 = scalar_lea.sflag [#allocation8], %s378
        %s380 = sand.u32 %s58, 1
        %s381 = smul.addr %s380, 8
        %s382 = scalar_lea.vmem [#allocation7], %s381
        // Predicated region
        $region53: #{tpu_custom_call.1} parent=51 // pred_check
          %p383 = pneg %p71
        $region54: #{tpu_custom_call.1} parent=51 // pred_check_branch
          %385 = sbr.rel (%p383) target = $region56
        $region55: #{tpu_custom_call.1} parent=51 // pred_region
          %386 = dma.done %s379, 128
        $region56: #{tpu_custom_call.1} parent=51 // pred_fallthru
          _
        %s387 = sand.u32 %s29, 1
        %s388 = scalar_lea.sflag [#allocation11], %s387
        %s389 = sand.u32 %s86, 1
        %s390 = smul.addr %s389, 8
        %s391 = scalar_lea.vmem [#allocation10], %s390
        // Predicated region
        $region57: #{tpu_custom_call.1} parent=51 // pred_check
          %p392 = pneg %p99
        $region58: #{tpu_custom_call.1} parent=51 // pred_check_branch
          %394 = sbr.rel (%p392) target = $region60
        $region59: #{tpu_custom_call.1} parent=51 // pred_region
          %395 = dma.done %s388, 128
        $region60: #{tpu_custom_call.1} parent=51 // pred_fallthru
          _
        %s396 = sand.u32 %s29, 1
        %s397 = scalar_lea.sflag [#allocation11], %s396
        %s398 = sand.u32 %s114, 1
        %s399 = smul.addr %s398, 8
        %s400 = scalar_lea.vmem [#allocation12], %s399
        // Predicated region
        $region61: #{tpu_custom_call.1} parent=51 // pred_check
          %p401 = pneg %p127
        $region62: #{tpu_custom_call.1} parent=51 // pred_check_branch
          %403 = sbr.rel (%p401) target = $region64
        $region63: #{tpu_custom_call.1} parent=51 // pred_region
          %404 = dma.done %s397, 128
        $region64: #{tpu_custom_call.1} parent=51 // pred_fallthru
          _
        // Predicated region
        $region65: #{tpu_custom_call.1} parent=51 // pred_check
          %p405 = pneg %p169
        $region66: #{tpu_custom_call.1} parent=51 // pred_check_branch
          %407 = sbr.rel (%p405) target = $region68
        $region67: #{tpu_custom_call.1} parent=51 // pred_region
          %408 = dma.done [#allocation14], 1536
        $region68: #{tpu_custom_call.1} parent=51 // pred_fallthru
          _
        // Predicated region
        $region69: #{tpu_custom_call.1} parent=51 // pred_check
          %p409 = pneg %p211
        $region70: #{tpu_custom_call.1} parent=51 // pred_check_branch
          %411 = sbr.rel (%p409) target = $region72
        $region71: #{tpu_custom_call.1} parent=51 // pred_region
          %412 = dma.done [#allocation14], 512
        $region72: #{tpu_custom_call.1} parent=51 // pred_fallthru
          _
        %s413 = sand.u32 %s58, 1
        %s414 = scalar_lea.sflag [#allocation8], %s413
        %s415 = sand.u32 %s58, 1
        %s416 = smul.addr %s415, 8
        %s417 = scalar_lea.vmem [#allocation7], %s416
        %p418 = pneg %p71
        %p419 = pneg %p68
        %s420 = sand.u32 %s29, 1
        %s421 = scalar_lea.sflag [#allocation11], %s420
        %s422 = sand.u32 %s86, 1
        %s423 = smul.addr %s422, 8
        %s424 = scalar_lea.vmem [#allocation10], %s423
        %p425 = pneg %p99
        %p426 = pneg %p96
        %s427 = sand.u32 %s29, 1
        %s428 = scalar_lea.sflag [#allocation11], %s427
        %s429 = sand.u32 %s114, 1
        %s430 = smul.addr %s429, 8
        %s431 = scalar_lea.vmem [#allocation12], %s430
        %p432 = pneg %p127
        %p433 = pneg %p124
        %p434 = pneg %p148
        %p435 = pneg %p145
        %p436 = pneg %p169
        %p437 = pneg %p166
        %p438 = pneg %p190
        %p439 = pneg %p187
        %p440 = pneg %p211
        %p441 = pneg %p208
        %p442 = pneg %p232
        %p443 = pneg %p229
        %p444 = pneg %p260
        %p445 = pneg %p257
        %s446 = sand.u32 %s247, 1
        %s447 = scalar_lea.sflag [#allocation9], %s446
        %s448 = sand.u32 %s247, 1
        %s449 = smul.addr %s448, 8
        %s450 = scalar_lea.vmem [#allocation16], %s449
        %v451 = vld [vmem:[%s3] sm:$0x1]
        %v452 = vld [vmem:[%s3 + $0x1] sm:$0x1]
        %p453 = scmp.eq.s32.totalorder %s36, 0
        // Predicated region
        $region73: #{tpu_custom_call.1} parent=51 // pred_check
          %p454 = pneg %p453
        $region74: #{tpu_custom_call.1} parent=51 // pred_check_branch
          %456 = sbr.rel (%p454) target = $region76
        $region75: #{tpu_custom_call.1} parent=51 // pred_region
          %v457 = vld [vmem:[%s382] sm:$0xff]
          %vm458 = vcmask 261120
          %v459 = vsel %vm458, %v457, 0.0
          %460 = vadd.xlane.f32.xlu0 %v459
          %v461 = vpop.xlane.xlu0 %460
          %v462 = vrcp.pop 32.0
          %v463 = vmul.f32 %v461, %v462
          %v464 = vsub.f32 %v457, %v463
          %v465 = vmul.f32 %v464, %v464
          %v466 = vsel %vm458, %v465, 0.0
          %467 = vadd.xlane.f32.xlu0 %v466
          %v468 = vpop.xlane.xlu0 %467
          %v469 = vmul.f32 %v468, %v462
          %v470 = vadd.f32 %v469, 1e-05
          %v471 = vrsqrt.pop %v470
          %v472 = vmul.f32 %v464, %v471
          %v473 = vlaneseq
          %v474 = vshrl.u32 %v473, 7
          %v475 = vsub.s32 0, %v474
          %v476 = vrot.slane %v451, %v475
          %v477 = vmul.f32 %v472, %v476
          %v478 = vlaneseq
          %v479 = vshrl.u32 %v478, 7
          %v480 = vsub.s32 0, %v479
          %v481 = vrot.slane %v452, %v480
          %v482 = vadd.f32 %v477, %v481
          %483 = vst.msk [vmem:[#allocation2] sm:$0xff] %vm458, %v482
          %v484 = vld [vmem:[#allocation13] sm:$0xff]
          %v485 = vld [vmem:[#allocation13 + $0x8] sm:$0xff]
          %v486 = vld [vmem:[#allocation13 + $0x10] sm:$0xff]
          %v487 = vld [vmem:[#allocation13 + $0x18] sm:$0xff]
          %v488 = vld [vmem:[%s5] sm:$0x1]
          %v489 = vlaneseq
          %v490 = vshrl.u32 %v489, 7
          %v491 = vsub.s32 0, %v490
          %v492 = vrot.slane %v488, %v491
          %v494 = vsel %vm458, %v482, 0
          %496 = vmatprep.subr.mxu0 0.0
          %497 = vmatpush1.msra.mxu0 0.0
          %498 = vmatprep.subr.mxu0 0.0
          %499 = vmatpush1.msra.mxu0 0.0
          %500 = vmatprep.subr.mxu0 0.0
          %501 = vmatpush1.msra.mxu0 0.0
          %502 = vmatprep.subr.mxu0 0.0
          %503 = vmatpush1.msra.mxu0 0.0
          %504 = vmatprep.subr.mxu0 0.0
          %505 = vmatpush1.msra.mxu0 0.0
          %506 = vmatprep.subr.mxu0 0.0
          %507 = vmatpush1.msra.mxu0 0.0
          %508 = vmatprep.subr.mxu0 0.0
          %509 = vmatpush1.msra.mxu0 0.0
          %510 = vmatprep.subr.mxu0 0.0
          %511 = vmatpush1.msra.mxu0 0.0
          %512 = vmatprep.subr.mxu0 0.0
          %513 = vmatpush1.msra.mxu0 0.0
          %514 = vmatprep.subr.mxu0 0.0
          %515 = vmatpush1.msra.mxu0 0.0
          %516 = vmatprep.subr.mxu0 0.0
          %517 = vmatpush1.msra.mxu0 0.0
          %518 = vmatprep.subr.mxu0 0.0
          %519 = vmatpush1.msra.mxu0 0.0
          %520 = vmatprep.subr.mxu0 0.0
          %521 = vmatpush1.msra.mxu0 %v487
          %522 = vmatprep.subr.mxu0 0.0
          %523 = vmatpush1.msra.mxu0 %v486
          %524 = vmatprep.subr.mxu0 0.0
          %525 = vmatpush1.msra.mxu0 %v485
          %526 = vmatprep.subr.mxu0 0.0
          %527 = vmatpush1.msra.mxu0 %v484
          %528 = vmatprep.subr.mxu0 0.0
          %529 = vmatpush2.msra.mxu0 0.0
          %530 = vmatprep.subr.mxu0 0.0
          %531 = vmatpush2.msra.mxu0 0.0
          %532 = vmatprep.subr.mxu0 0.0
          %533 = vmatpush2.msra.mxu0 0.0
          %534 = vmatprep.subr.mxu0 0.0
          %535 = vmatpush2.msra.mxu0 0.0
          %536 = vmatprep.subr.mxu0 0.0
          %537 = vmatpush2.msra.mxu0 0.0
          %538 = vmatprep.subr.mxu0 0.0
          %539 = vmatpush2.msra.mxu0 0.0
          %540 = vmatprep.subr.mxu0 0.0
          %541 = vmatpush2.msra.mxu0 0.0
          %542 = vmatprep.subr.mxu0 0.0
          %543 = vmatpush2.msra.mxu0 0.0
          %544 = vmatprep.subr.mxu0 0.0
          %545 = vmatpush2.msra.mxu0 0.0
          %546 = vmatprep.subr.mxu0 0.0
          %547 = vmatpush2.msra.mxu0 0.0
          %548 = vmatprep.subr.mxu0 0.0
          %549 = vmatpush2.msra.mxu0 0.0
          %550 = vmatprep.subr.mxu0 0.0
          %551 = vmatpush2.msra.mxu0 0.0
          %552 = vmatprep.subr.mxu0 0.0
          %553 = vmatpush2.msra.mxu0 0.0
          %554 = vmatprep.subr.mxu0 0.0
          %555 = vmatpush2.msra.mxu0 0.0
          %556 = vmatprep.subr.mxu0 0.0
          %557 = vmatpush2.msra.mxu0 0.0
          %558 = vmatprep.subr.mxu0 0.0
          %559 = vmatpush2.msra.mxu0 0.0
          %560 = vmatprep.mubr.f32.mxu0 0.0
          %561 = vmatmul.mubr.f32.gmra.mxu0 %v494
          %v562 = vpop.f32.mrf.mxu0
          %v563 = vadd.f32 %v492, %v562
          %v564 = vpop.f32.mrf.mxu0
          %565 = vdwg.mxu0
          %567 = vrot.lane.b32.xlu0 %v563, 120
          %v568 = vpop.permute.xlu0 %567
          %570 = vrot.lane.b32.xlu0 %v563, 112
          %v571 = vpop.permute.xlu0 %570
          %573 = vrot.lane.b32.xlu0 %v563, 104
          %v574 = vpop.permute.xlu0 %573
          %vm576 = vcmask 64512
          %577 = vst.msk [vmem:[#allocation3] sm:$0xff] %vm576, %v563
          %578 = vst.msk [vmem:[#allocation3 + $0x8] sm:$0xff] %vm576, %v568
          %579 = vst.msk [vmem:[#allocation3 + $0x10] sm:$0xff] %vm576, %v571
          %580 = vst.msk [vmem:[#allocation3 + $0x18] sm:$0xff] %vm576, %v574
          %vm581 = vcmask 7168
          %582 = vst.msk [vmem:[#allocation4] sm:$0xff] %vm581, -inf
          %583 = vst.msk [vmem:[#allocation4 + $0x8] sm:$0xff] %vm581, -inf
          %584 = vst.msk [vmem:[#allocation4 + $0x10] sm:$0xff] %vm581, -inf
          %585 = vst.msk [vmem:[#allocation4 + $0x18] sm:$0xff] %vm581, -inf
          %586 = vst.msk [vmem:[#allocation5] sm:$0xff] %vm581, 0.0
          %587 = vst.msk [vmem:[#allocation5 + $0x8] sm:$0xff] %vm581, 0.0
          %588 = vst.msk [vmem:[#allocation5 + $0x10] sm:$0xff] %vm581, 0.0
          %589 = vst.msk [vmem:[#allocation5 + $0x18] sm:$0xff] %vm581, 0.0
          %590 = vst.msk [vmem:[#allocation6] sm:$0xff] %vm576, 0.0
          %591 = vst.msk [vmem:[#allocation6 + $0x8] sm:$0xff] %vm576, 0.0
          %592 = vst.msk [vmem:[#allocation6 + $0x10] sm:$0xff] %vm576, 0.0
          %593 = vst.msk [vmem:[#allocation6 + $0x18] sm:$0xff] %vm576, 0.0
        $region76: #{tpu_custom_call.1} parent=51 // pred_fallthru
          _
        %s594 = smul.u32 %s36, 8
        %s595 = smul.u32 %s35, 8
        %s596 = sadd.s32 %s595, 7
        %p597 = scmp.le.s32.totalorder %s594, %s596
        // Predicated region
        $region77: #{tpu_custom_call.1} parent=51 // pred_check
          %p598 = pneg %p597
        $region78: #{tpu_custom_call.1} parent=51 // pred_check_branch
          %600 = sbr.rel (%p598) target = $region80
        $region79: #{tpu_custom_call.1} parent=51 // pred_region
          %v601 = vld [vmem:[%s391] sm:$0xff]
          %vm602 = vcmask 261120
          %v603 = vsel %vm602, %v601, 0.0
          %604 = vadd.xlane.f32.xlu0 %v603
          %v605 = vpop.xlane.xlu0 %604
          %v606 = vrcp.pop 32.0
          %v607 = vmul.f32 %v605, %v606
          %v608 = vsub.f32 %v601, %v607
          %v609 = vmul.f32 %v608, %v608
          %v610 = vsel %vm602, %v609, 0.0
          %611 = vadd.xlane.f32.xlu0 %v610
          %v612 = vpop.xlane.xlu0 %611
          %v613 = vmul.f32 %v612, %v606
          %v614 = vadd.f32 %v613, 1e-05
          %v615 = vrsqrt.pop %v614
          %v616 = vmul.f32 %v608, %v615
          %v617 = vlaneseq
          %v618 = vshrl.u32 %v617, 7
          %v619 = vsub.s32 0, %v618
          %v620 = vrot.slane %v451, %v619
          %v621 = vmul.f32 %v616, %v620
          %v622 = vlaneseq
          %v623 = vshrl.u32 %v622, 7
          %v624 = vsub.s32 0, %v623
          %v625 = vrot.slane %v452, %v624
          %v626 = vadd.f32 %v621, %v625
          %v627 = vld [vmem:[%s400] sm:$0xff]
          %v628 = vsel %vm602, %v627, 0.0
          %629 = vadd.xlane.f32.xlu0 %v628
          %v630 = vpop.xlane.xlu0 %629
          %v631 = vmul.f32 %v630, %v606
          %v632 = vsub.f32 %v627, %v631
          %v633 = vmul.f32 %v632, %v632
          %v634 = vsel %vm602, %v633, 0.0
          %635 = vadd.xlane.f32.xlu0 %v634
          %v636 = vpop.xlane.xlu0 %635
          %v637 = vmul.f32 %v636, %v606
          %v638 = vadd.f32 %v637, 1e-05
          %v639 = vrsqrt.pop %v638
          %v640 = vmul.f32 %v632, %v639
          %v641 = vmul.f32 %v640, %v620
          %v642 = vadd.f32 %v641, %v625
          %s643 = scalar_lea.vmem [#allocation13], 32
          %v644 = vld [vmem:[%s643] sm:$0xff]
          %v645 = vld [vmem:[%s643 + $0x8] sm:$0xff]
          %v646 = vld [vmem:[%s643 + $0x10] sm:$0xff]
          %v647 = vld [vmem:[%s643 + $0x18] sm:$0xff]
          %v648 = vld [vmem:[%s5 + $0x1] sm:$0x1]
          %v649 = vlaneseq
          %v650 = vshrl.u32 %v649, 7
          %v651 = vsub.s32 0, %v650
          %v652 = vrot.slane %v648, %v651
          %v654 = vsel %vm602, %v626, 0
          %656 = vmatprep.subr.mxu0 0.0
          %657 = vmatpush1.msra.mxu0 0.0
          %658 = vmatprep.subr.mxu0 0.0
          %659 = vmatpush1.msra.mxu0 0.0
          %660 = vmatprep.subr.mxu0 0.0
          %661 = vmatpush1.msra.mxu0 0.0
          %662 = vmatprep.subr.mxu0 0.0
          %663 = vmatpush1.msra.mxu0 0.0
          %664 = vmatprep.subr.mxu0 0.0
          %665 = vmatpush1.msra.mxu0 0.0
          %666 = vmatprep.subr.mxu0 0.0
          %667 = vmatpush1.msra.mxu0 0.0
          %668 = vmatprep.subr.mxu0 0.0
          %669 = vmatpush1.msra.mxu0 0.0
          %670 = vmatprep.subr.mxu0 0.0
          %671 = vmatpush1.msra.mxu0 0.0
          %672 = vmatprep.subr.mxu0 0.0
          %673 = vmatpush1.msra.mxu0 0.0
          %674 = vmatprep.subr.mxu0 0.0
          %675 = vmatpush1.msra.mxu0 0.0
          %676 = vmatprep.subr.mxu0 0.0
          %677 = vmatpush1.msra.mxu0 0.0
          %678 = vmatprep.subr.mxu0 0.0
          %679 = vmatpush1.msra.mxu0 0.0
          %680 = vmatprep.subr.mxu0 0.0
          %681 = vmatpush1.msra.mxu0 %v647
          %682 = vmatprep.subr.mxu0 0.0
          %683 = vmatpush1.msra.mxu0 %v646
          %684 = vmatprep.subr.mxu0 0.0
          %685 = vmatpush1.msra.mxu0 %v645
          %686 = vmatprep.subr.mxu0 0.0
          %687 = vmatpush1.msra.mxu0 %v644
          %688 = vmatprep.subr.mxu0 0.0
          %689 = vmatpush2.msra.mxu0 0.0
          %690 = vmatprep.subr.mxu0 0.0
          %691 = vmatpush2.msra.mxu0 0.0
          %692 = vmatprep.subr.mxu0 0.0
          %693 = vmatpush2.msra.mxu0 0.0
          %694 = vmatprep.subr.mxu0 0.0
          %695 = vmatpush2.msra.mxu0 0.0
          %696 = vmatprep.subr.mxu0 0.0
          %697 = vmatpush2.msra.mxu0 0.0
          %698 = vmatprep.subr.mxu0 0.0
          %699 = vmatpush2.msra.mxu0 0.0
          %700 = vmatprep.subr.mxu0 0.0
          %701 = vmatpush2.msra.mxu0 0.0
          %702 = vmatprep.subr.mxu0 0.0
          %703 = vmatpush2.msra.mxu0 0.0
          %704 = vmatprep.subr.mxu0 0.0
          %705 = vmatpush2.msra.mxu0 0.0
          %706 = vmatprep.subr.mxu0 0.0
          %707 = vmatpush2.msra.mxu0 0.0
          %708 = vmatprep.subr.mxu0 0.0
          %709 = vmatpush2.msra.mxu0 0.0
          %710 = vmatprep.subr.mxu0 0.0
          %711 = vmatpush2.msra.mxu0 0.0
          %712 = vmatprep.subr.mxu0 0.0
          %713 = vmatpush2.msra.mxu0 0.0
          %714 = vmatprep.subr.mxu0 0.0
          %715 = vmatpush2.msra.mxu0 0.0
          %716 = vmatprep.subr.mxu0 0.0
          %717 = vmatpush2.msra.mxu0 0.0
          %718 = vmatprep.subr.mxu0 0.0
          %719 = vmatpush2.msra.mxu0 0.0
          %720 = vmatprep.mubr.f32.mxu0 0.0
          %721 = vmatmul.mubr.f32.gmra.mxu0 %v654
          %v722 = vpop.f32.mrf.mxu0
          %v723 = vadd.f32 %v652, %v722
          %v724 = vpop.f32.mrf.mxu0
          %725 = vdwg.mxu0
          %s726 = scalar_lea.vmem [#allocation13], 64
          %v727 = vld [vmem:[%s726] sm:$0xff]
          %v728 = vld [vmem:[%s726 + $0x8] sm:$0xff]
          %v729 = vld [vmem:[%s726 + $0x10] sm:$0xff]
          %v730 = vld [vmem:[%s726 + $0x18] sm:$0xff]
          %v731 = vld [vmem:[%s5 + $0x2] sm:$0x1]
          %v732 = vlaneseq
          %v733 = vshrl.u32 %v732, 7
          %v734 = vsub.s32 0, %v733
          %v735 = vrot.slane %v731, %v734
          %v737 = vsel %vm602, %v642, 0
          %739 = vmatprep.subr.mxu0 0.0
          %740 = vmatpush1.msra.mxu0 0.0
          %741 = vmatprep.subr.mxu0 0.0
          %742 = vmatpush1.msra.mxu0 0.0
          %743 = vmatprep.subr.mxu0 0.0
          %744 = vmatpush1.msra.mxu0 0.0
          %745 = vmatprep.subr.mxu0 0.0
          %746 = vmatpush1.msra.mxu0 0.0
          %747 = vmatprep.subr.mxu0 0.0
          %748 = vmatpush1.msra.mxu0 0.0
          %749 = vmatprep.subr.mxu0 0.0
          %750 = vmatpush1.msra.mxu0 0.0
          %751 = vmatprep.subr.mxu0 0.0
          %752 = vmatpush1.msra.mxu0 0.0
          %753 = vmatprep.subr.mxu0 0.0
          %754 = vmatpush1.msra.mxu0 0.0
          %755 = vmatprep.subr.mxu0 0.0
          %756 = vmatpush1.msra.mxu0 0.0
          %757 = vmatprep.subr.mxu0 0.0
          %758 = vmatpush1.msra.mxu0 0.0
          %759 = vmatprep.subr.mxu0 0.0
          %760 = vmatpush1.msra.mxu0 0.0
          %761 = vmatprep.subr.mxu0 0.0
          %762 = vmatpush1.msra.mxu0 0.0
          %763 = vmatprep.subr.mxu0 0.0
          %764 = vmatpush1.msra.mxu0 %v730
          %765 = vmatprep.subr.mxu0 0.0
          %766 = vmatpush1.msra.mxu0 %v729
          %767 = vmatprep.subr.mxu0 0.0
          %768 = vmatpush1.msra.mxu0 %v728
          %769 = vmatprep.subr.mxu0 0.0
          %770 = vmatpush1.msra.mxu0 %v727
          %771 = vmatprep.subr.mxu0 0.0
          %772 = vmatpush2.msra.mxu0 0.0
          %773 = vmatprep.subr.mxu0 0.0
          %774 = vmatpush2.msra.mxu0 0.0
          %775 = vmatprep.subr.mxu0 0.0
          %776 = vmatpush2.msra.mxu0 0.0
          %777 = vmatprep.subr.mxu0 0.0
          %778 = vmatpush2.msra.mxu0 0.0
          %779 = vmatprep.subr.mxu0 0.0
          %780 = vmatpush2.msra.mxu0 0.0
          %781 = vmatprep.subr.mxu0 0.0
          %782 = vmatpush2.msra.mxu0 0.0
          %783 = vmatprep.subr.mxu0 0.0
          %784 = vmatpush2.msra.mxu0 0.0
          %785 = vmatprep.subr.mxu0 0.0
          %786 = vmatpush2.msra.mxu0 0.0
          %787 = vmatprep.subr.mxu0 0.0
          %788 = vmatpush2.msra.mxu0 0.0
          %789 = vmatprep.subr.mxu0 0.0
          %790 = vmatpush2.msra.mxu0 0.0
          %791 = vmatprep.subr.mxu0 0.0
          %792 = vmatpush2.msra.mxu0 0.0
          %793 = vmatprep.subr.mxu0 0.0
          %794 = vmatpush2.msra.mxu0 0.0
          %795 = vmatprep.subr.mxu0 0.0
          %796 = vmatpush2.msra.mxu0 0.0
          %797 = vmatprep.subr.mxu0 0.0
          %798 = vmatpush2.msra.mxu0 0.0
          %799 = vmatprep.subr.mxu0 0.0
          %800 = vmatpush2.msra.mxu0 0.0
          %801 = vmatprep.subr.mxu0 0.0
          %802 = vmatpush2.msra.mxu0 0.0
          %803 = vmatprep.mubr.f32.mxu0 0.0
          %804 = vmatmul.mubr.f32.gmra.mxu0 %v737
          %v805 = vpop.f32.mrf.mxu0
          %v806 = vadd.f32 %v735, %v805
          %v807 = vpop.f32.mrf.mxu0
          %808 = vdwg.mxu0
          %810 = vrot.lane.b32.xlu0 %v723, 120
          %v811 = vpop.permute.xlu0 %810
          %812 = vrot.lane.b32.xlu0 %v723, 112
          %v813 = vpop.permute.xlu0 %812
          %814 = vrot.lane.b32.xlu0 %v723, 104
          %v815 = vpop.permute.xlu0 %814
          %817 = vrot.lane.b32.xlu0 %v806, 120
          %v818 = vpop.permute.xlu0 %817
          %820 = vrot.lane.b32.xlu0 %v806, 112
          %v821 = vpop.permute.xlu0 %820
          %823 = vrot.lane.b32.xlu0 %v806, 104
          %v824 = vpop.permute.xlu0 %823
          %v826 = vld [vmem:[#allocation3] sm:$0xff]
          %v827 = vld [vmem:[#allocation3 + $0x8] sm:$0xff]
          %v828 = vld [vmem:[#allocation3 + $0x10] sm:$0xff]
          %v829 = vld [vmem:[#allocation3 + $0x18] sm:$0xff]
          %vm830 = vcmask 64512
          %v832 = vsel %vm830, %v826, 0
          %v834 = vsel %vm830, %v723, 0
          %836 = vmatprep.subr.mxu0 0.0
          %837 = vmatpush1.xpose.msra.mxu0 0.0
          %838 = vmatprep.subr.mxu0 0.0
          %839 = vmatpush1.xpose.msra.mxu0 0.0
          %840 = vmatprep.subr.mxu0 0.0
          %841 = vmatpush1.xpose.msra.mxu0 0.0
          %842 = vmatprep.subr.mxu0 0.0
          %843 = vmatpush1.xpose.msra.mxu0 0.0
          %844 = vmatprep.subr.mxu0 0.0
          %845 = vmatpush1.xpose.msra.mxu0 0.0
          %846 = vmatprep.subr.mxu0 0.0
          %847 = vmatpush1.xpose.msra.mxu0 0.0
          %848 = vmatprep.subr.mxu0 0.0
          %849 = vmatpush1.xpose.msra.mxu0 0.0
          %850 = vmatprep.subr.mxu0 0.0
          %851 = vmatpush1.xpose.msra.mxu0 0.0
          %852 = vmatprep.subr.mxu0 0.0
          %853 = vmatpush1.xpose.msra.mxu0 0.0
          %854 = vmatprep.subr.mxu0 0.0
          %855 = vmatpush1.xpose.msra.mxu0 0.0
          %856 = vmatprep.subr.mxu0 0.0
          %857 = vmatpush1.xpose.msra.mxu0 0.0
          %858 = vmatprep.subr.mxu0 0.0
          %859 = vmatpush1.xpose.msra.mxu0 0.0
          %860 = vmatprep.subr.mxu0 0.0
          %861 = vmatpush1.xpose.msra.mxu0 0.0
          %862 = vmatprep.subr.mxu0 0.0
          %863 = vmatpush1.xpose.msra.mxu0 0.0
          %864 = vmatprep.subr.mxu0 0.0
          %865 = vmatpush1.xpose.msra.mxu0 0.0
          %866 = vmatprep.subr.mxu0 0.0
          %867 = vmatpush1.xpose.msra.mxu0 %v834
          %868 = vmatprep.subr.mxu0 0.0
          %869 = vmatpush2.xpose.msra.mxu0 0.0
          %870 = vmatprep.subr.mxu0 0.0
          %871 = vmatpush2.xpose.msra.mxu0 0.0
          %872 = vmatprep.subr.mxu0 0.0
          %873 = vmatpush2.xpose.msra.mxu0 0.0
          %874 = vmatprep.subr.mxu0 0.0
          %875 = vmatpush2.xpose.msra.mxu0 0.0
          %876 = vmatprep.subr.mxu0 0.0
          %877 = vmatpush2.xpose.msra.mxu0 0.0
          %878 = vmatprep.subr.mxu0 0.0
          %879 = vmatpush2.xpose.msra.mxu0 0.0
          %880 = vmatprep.subr.mxu0 0.0
          %881 = vmatpush2.xpose.msra.mxu0 0.0
          %882 = vmatprep.subr.mxu0 0.0
          %883 = vmatpush2.xpose.msra.mxu0 0.0
          %884 = vmatprep.subr.mxu0 0.0
          %885 = vmatpush2.xpose.msra.mxu0 0.0
          %886 = vmatprep.subr.mxu0 0.0
          %887 = vmatpush2.xpose.msra.mxu0 0.0
          %888 = vmatprep.subr.mxu0 0.0
          %889 = vmatpush2.xpose.msra.mxu0 0.0
          %890 = vmatprep.subr.mxu0 0.0
          %891 = vmatpush2.xpose.msra.mxu0 0.0
          %892 = vmatprep.subr.mxu0 0.0
          %893 = vmatpush2.xpose.msra.mxu0 0.0
          %894 = vmatprep.subr.mxu0 0.0
          %895 = vmatpush2.xpose.msra.mxu0 0.0
          %896 = vmatprep.subr.mxu0 0.0
          %897 = vmatpush2.xpose.msra.mxu0 0.0
          %898 = vmatprep.subr.mxu0 0.0
          %899 = vmatpush2.xpose.msra.mxu0 0.0
          %900 = vmatprep.mubr.f32.mxu0 0.0
          %901 = vmatmul.mubr.f32.gmra.mxu0 %v832
          %v902 = vpop.f32.mrf.mxu0
          %v903 = vadd.f32 0.0, %v902
          %v904 = vpop.f32.mrf.mxu0
          %905 = vdwg.mxu0
          %v907 = vsel %vm830, %v827, 0
          %v909 = vsel %vm830, %v811, 0
          %911 = vmatprep.subr.mxu0 0.0
          %912 = vmatpush1.xpose.msra.mxu0 0.0
          %913 = vmatprep.subr.mxu0 0.0
          %914 = vmatpush1.xpose.msra.mxu0 0.0
          %915 = vmatprep.subr.mxu0 0.0
          %916 = vmatpush1.xpose.msra.mxu0 0.0
          %917 = vmatprep.subr.mxu0 0.0
          %918 = vmatpush1.xpose.msra.mxu0 0.0
          %919 = vmatprep.subr.mxu0 0.0
          %920 = vmatpush1.xpose.msra.mxu0 0.0
          %921 = vmatprep.subr.mxu0 0.0
          %922 = vmatpush1.xpose.msra.mxu0 0.0
          %923 = vmatprep.subr.mxu0 0.0
          %924 = vmatpush1.xpose.msra.mxu0 0.0
          %925 = vmatprep.subr.mxu0 0.0
          %926 = vmatpush1.xpose.msra.mxu0 0.0
          %927 = vmatprep.subr.mxu0 0.0
          %928 = vmatpush1.xpose.msra.mxu0 0.0
          %929 = vmatprep.subr.mxu0 0.0
          %930 = vmatpush1.xpose.msra.mxu0 0.0
          %931 = vmatprep.subr.mxu0 0.0
          %932 = vmatpush1.xpose.msra.mxu0 0.0
          %933 = vmatprep.subr.mxu0 0.0
          %934 = vmatpush1.xpose.msra.mxu0 0.0
          %935 = vmatprep.subr.mxu0 0.0
          %936 = vmatpush1.xpose.msra.mxu0 0.0
          %937 = vmatprep.subr.mxu0 0.0
          %938 = vmatpush1.xpose.msra.mxu0 0.0
          %939 = vmatprep.subr.mxu0 0.0
          %940 = vmatpush1.xpose.msra.mxu0 0.0
          %941 = vmatprep.subr.mxu0 0.0
          %942 = vmatpush1.xpose.msra.mxu0 %v909
          %943 = vmatprep.subr.mxu0 0.0
          %944 = vmatpush2.xpose.msra.mxu0 0.0
          %945 = vmatprep.subr.mxu0 0.0
          %946 = vmatpush2.xpose.msra.mxu0 0.0
          %947 = vmatprep.subr.mxu0 0.0
          %948 = vmatpush2.xpose.msra.mxu0 0.0
          %949 = vmatprep.subr.mxu0 0.0
          %950 = vmatpush2.xpose.msra.mxu0 0.0
          %951 = vmatprep.subr.mxu0 0.0
          %952 = vmatpush2.xpose.msra.mxu0 0.0
          %953 = vmatprep.subr.mxu0 0.0
          %954 = vmatpush2.xpose.msra.mxu0 0.0
          %955 = vmatprep.subr.mxu0 0.0
          %956 = vmatpush2.xpose.msra.mxu0 0.0
          %957 = vmatprep.subr.mxu0 0.0
          %958 = vmatpush2.xpose.msra.mxu0 0.0
          %959 = vmatprep.subr.mxu0 0.0
          %960 = vmatpush2.xpose.msra.mxu0 0.0
          %961 = vmatprep.subr.mxu0 0.0
          %962 = vmatpush2.xpose.msra.mxu0 0.0
          %963 = vmatprep.subr.mxu0 0.0
          %964 = vmatpush2.xpose.msra.mxu0 0.0
          %965 = vmatprep.subr.mxu0 0.0
          %966 = vmatpush2.xpose.msra.mxu0 0.0
          %967 = vmatprep.subr.mxu0 0.0
          %968 = vmatpush2.xpose.msra.mxu0 0.0
          %969 = vmatprep.subr.mxu0 0.0
          %970 = vmatpush2.xpose.msra.mxu0 0.0
          %971 = vmatprep.subr.mxu0 0.0
          %972 = vmatpush2.xpose.msra.mxu0 0.0
          %973 = vmatprep.subr.mxu0 0.0
          %974 = vmatpush2.xpose.msra.mxu0 0.0
          %975 = vmatprep.mubr.f32.mxu0 0.0
          %976 = vmatmul.mubr.f32.gmra.mxu0 %v907
          %v977 = vpop.f32.mrf.mxu0
          %v978 = vadd.f32 0.0, %v977
          %v979 = vpop.f32.mrf.mxu0
          %980 = vdwg.mxu0
          %v982 = vsel %vm830, %v828, 0
          %v984 = vsel %vm830, %v813, 0
          %986 = vmatprep.subr.mxu0 0.0
          %987 = vmatpush1.xpose.msra.mxu0 0.0
          %988 = vmatprep.subr.mxu0 0.0
          %989 = vmatpush1.xpose.msra.mxu0 0.0
          %990 = vmatprep.subr.mxu0 0.0
          %991 = vmatpush1.xpose.msra.mxu0 0.0
          %992 = vmatprep.subr.mxu0 0.0
          %993 = vmatpush1.xpose.msra.mxu0 0.0
          %994 = vmatprep.subr.mxu0 0.0
          %995 = vmatpush1.xpose.msra.mxu0 0.0
          %996 = vmatprep.subr.mxu0 0.0
          %997 = vmatpush1.xpose.msra.mxu0 0.0
          %998 = vmatprep.subr.mxu0 0.0
          %999 = vmatpush1.xpose.msra.mxu0 0.0
          %1000 = vmatprep.subr.mxu0 0.0
          %1001 = vmatpush1.xpose.msra.mxu0 0.0
          %1002 = vmatprep.subr.mxu0 0.0
          %1003 = vmatpush1.xpose.msra.mxu0 0.0
          %1004 = vmatprep.subr.mxu0 0.0
          %1005 = vmatpush1.xpose.msra.mxu0 0.0
          %1006 = vmatprep.subr.mxu0 0.0
          %1007 = vmatpush1.xpose.msra.mxu0 0.0
          %1008 = vmatprep.subr.mxu0 0.0
          %1009 = vmatpush1.xpose.msra.mxu0 0.0
          %1010 = vmatprep.subr.mxu0 0.0
          %1011 = vmatpush1.xpose.msra.mxu0 0.0
          %1012 = vmatprep.subr.mxu0 0.0
          %1013 = vmatpush1.xpose.msra.mxu0 0.0
          %1014 = vmatprep.subr.mxu0 0.0
          %1015 = vmatpush1.xpose.msra.mxu0 0.0
          %1016 = vmatprep.subr.mxu0 0.0
          %1017 = vmatpush1.xpose.msra.mxu0 %v984
          %1018 = vmatprep.subr.mxu0 0.0
          %1019 = vmatpush2.xpose.msra.mxu0 0.0
          %1020 = vmatprep.subr.mxu0 0.0
          %1021 = vmatpush2.xpose.msra.mxu0 0.0
          %1022 = vmatprep.subr.mxu0 0.0
          %1023 = vmatpush2.xpose.msra.mxu0 0.0
          %1024 = vmatprep.subr.mxu0 0.0
          %1025 = vmatpush2.xpose.msra.mxu0 0.0
          %1026 = vmatprep.subr.mxu0 0.0
          %1027 = vmatpush2.xpose.msra.mxu0 0.0
          %1028 = vmatprep.subr.mxu0 0.0
          %1029 = vmatpush2.xpose.msra.mxu0 0.0
          %1030 = vmatprep.subr.mxu0 0.0
          %1031 = vmatpush2.xpose.msra.mxu0 0.0
          %1032 = vmatprep.subr.mxu0 0.0
          %1033 = vmatpush2.xpose.msra.mxu0 0.0
          %1034 = vmatprep.subr.mxu0 0.0
          %1035 = vmatpush2.xpose.msra.mxu0 0.0
          %1036 = vmatprep.subr.mxu0 0.0
          %1037 = vmatpush2.xpose.msra.mxu0 0.0
          %1038 = vmatprep.subr.mxu0 0.0
          %1039 = vmatpush2.xpose.msra.mxu0 0.0
          %1040 = vmatprep.subr.mxu0 0.0
          %1041 = vmatpush2.xpose.msra.mxu0 0.0
          %1042 = vmatprep.subr.mxu0 0.0
          %1043 = vmatpush2.xpose.msra.mxu0 0.0
          %1044 = vmatprep.subr.mxu0 0.0
          %1045 = vmatpush2.xpose.msra.mxu0 0.0
          %1046 = vmatprep.subr.mxu0 0.0
          %1047 = vmatpush2.xpose.msra.mxu0 0.0
          %1048 = vmatprep.subr.mxu0 0.0
          %1049 = vmatpush2.xpose.msra.mxu0 0.0
          %1050 = vmatprep.mubr.f32.mxu0 0.0
          %1051 = vmatmul.mubr.f32.gmra.mxu0 %v982
          %v1052 = vpop.f32.mrf.mxu0
          %v1053 = vadd.f32 0.0, %v1052
          %v1054 = vpop.f32.mrf.mxu0
          %1055 = vdwg.mxu0
          %v1057 = vsel %vm830, %v829, 0
          %v1059 = vsel %vm830, %v815, 0
          %1061 = vmatprep.subr.mxu0 0.0
          %1062 = vmatpush1.xpose.msra.mxu0 0.0
          %1063 = vmatprep.subr.mxu0 0.0
          %1064 = vmatpush1.xpose.msra.mxu0 0.0
          %1065 = vmatprep.subr.mxu0 0.0
          %1066 = vmatpush1.xpose.msra.mxu0 0.0
          %1067 = vmatprep.subr.mxu0 0.0
          %1068 = vmatpush1.xpose.msra.mxu0 0.0
          %1069 = vmatprep.subr.mxu0 0.0
          %1070 = vmatpush1.xpose.msra.mxu0 0.0
          %1071 = vmatprep.subr.mxu0 0.0
          %1072 = vmatpush1.xpose.msra.mxu0 0.0
          %1073 = vmatprep.subr.mxu0 0.0
          %1074 = vmatpush1.xpose.msra.mxu0 0.0
          %1075 = vmatprep.subr.mxu0 0.0
          %1076 = vmatpush1.xpose.msra.mxu0 0.0
          %1077 = vmatprep.subr.mxu0 0.0
          %1078 = vmatpush1.xpose.msra.mxu0 0.0
          %1079 = vmatprep.subr.mxu0 0.0
          %1080 = vmatpush1.xpose.msra.mxu0 0.0
          %1081 = vmatprep.subr.mxu0 0.0
          %1082 = vmatpush1.xpose.msra.mxu0 0.0
          %1083 = vmatprep.subr.mxu0 0.0
          %1084 = vmatpush1.xpose.msra.mxu0 0.0
          %1085 = vmatprep.subr.mxu0 0.0
          %1086 = vmatpush1.xpose.msra.mxu0 0.0
          %1087 = vmatprep.subr.mxu0 0.0
          %1088 = vmatpush1.xpose.msra.mxu0 0.0
          %1089 = vmatprep.subr.mxu0 0.0
          %1090 = vmatpush1.xpose.msra.mxu0 0.0
          %1091 = vmatprep.subr.mxu0 0.0
          %1092 = vmatpush1.xpose.msra.mxu0 %v1059
          %1093 = vmatprep.subr.mxu0 0.0
          %1094 = vmatpush2.xpose.msra.mxu0 0.0
          %1095 = vmatprep.subr.mxu0 0.0
          %1096 = vmatpush2.xpose.msra.mxu0 0.0
          %1097 = vmatprep.subr.mxu0 0.0
          %1098 = vmatpush2.xpose.msra.mxu0 0.0
          %1099 = vmatprep.subr.mxu0 0.0
          %1100 = vmatpush2.xpose.msra.mxu0 0.0
          %1101 = vmatprep.subr.mxu0 0.0
          %1102 = vmatpush2.xpose.msra.mxu0 0.0
          %1103 = vmatprep.subr.mxu0 0.0
          %1104 = vmatpush2.xpose.msra.mxu0 0.0
          %1105 = vmatprep.subr.mxu0 0.0
          %1106 = vmatpush2.xpose.msra.mxu0 0.0
          %1107 = vmatprep.subr.mxu0 0.0
          %1108 = vmatpush2.xpose.msra.mxu0 0.0
          %1109 = vmatprep.subr.mxu0 0.0
          %1110 = vmatpush2.xpose.msra.mxu0 0.0
          %1111 = vmatprep.subr.mxu0 0.0
          %1112 = vmatpush2.xpose.msra.mxu0 0.0
          %1113 = vmatprep.subr.mxu0 0.0
          %1114 = vmatpush2.xpose.msra.mxu0 0.0
          %1115 = vmatprep.subr.mxu0 0.0
          %1116 = vmatpush2.xpose.msra.mxu0 0.0
          %1117 = vmatprep.subr.mxu0 0.0
          %1118 = vmatpush2.xpose.msra.mxu0 0.0
          %1119 = vmatprep.subr.mxu0 0.0
          %1120 = vmatpush2.xpose.msra.mxu0 0.0
          %1121 = vmatprep.subr.mxu0 0.0
          %1122 = vmatpush2.xpose.msra.mxu0 0.0
          %1123 = vmatprep.subr.mxu0 0.0
          %1124 = vmatpush2.xpose.msra.mxu0 0.0
          %1125 = vmatprep.mubr.f32.mxu0 0.0
          %1126 = vmatmul.mubr.f32.gmra.mxu0 %v1057
          %v1127 = vpop.f32.mrf.mxu0
          %v1128 = vadd.f32 0.0, %v1127
          %v1129 = vpop.f32.mrf.mxu0
          %1130 = vdwg.mxu0
          %v1131 = vlaneseq
          %v1132 = vshrl.u32 %v1131, 7
          %v1133 = vstv %s595
          %v1134 = vadd.s32 %v1133, %v1132
          %v1135 = vlaneseq
          %v1136 = vand.u32 %v1135, 127
          %v1137 = vstv %s594
          %v1138 = vadd.s32 %v1137, %v1136
          %vm1139 = vcmp.gt.s32.totalorder %v1138, %v1134
          %v1140 = vsel %vm1139, 1, 0
          %vm1141 = vcmp.eq.s32.totalorder %v1140, 1
          %v1142 = vsel %vm1141, -1e+30, %v903
          %v1143 = vsel %vm1141, -1e+30, %v978
          %v1144 = vsel %vm1141, -1e+30, %v1053
          %v1145 = vsel %vm1141, -1e+30, %v1128
          %v1146 = vld [vmem:[#allocation4] sm:$0xff]
          %v1147 = vld [vmem:[#allocation4 + $0x8] sm:$0xff]
          %v1148 = vld [vmem:[#allocation4 + $0x10] sm:$0xff]
          %v1149 = vld [vmem:[#allocation4 + $0x18] sm:$0xff]
          %v1150 = vsel %vm830, %v1142, -inf
          %1151 = vmax.xlane.f32.xlu0 %v1150
          %v1152 = vpop.xlane.xlu0 %1151
          %v1153 = vsel %vm830, %v1143, -inf
          %1154 = vmax.xlane.f32.xlu0 %v1153
          %v1155 = vpop.xlane.xlu0 %1154
          %v1156 = vsel %vm830, %v1144, -inf
          %1157 = vmax.xlane.f32.xlu0 %v1156
          %v1158 = vpop.xlane.xlu0 %1157
          %v1159 = vsel %vm830, %v1145, -inf
          %1160 = vmax.xlane.f32.xlu0 %v1159
          %v1161 = vpop.xlane.xlu0 %1160
          %v1162 = vmax.f32 %v1146, %v1152
          %v1163 = vmax.f32 %v1147, %v1155
          %v1164 = vmax.f32 %v1148, %v1158
          %v1165 = vmax.f32 %v1149, %v1161
          %v1166 = vsub.f32 %v1146, %v1162
          %v1167 = vsub.f32 %v1147, %v1163
          %v1168 = vsub.f32 %v1148, %v1164
          %v1169 = vsub.f32 %v1149, %v1165
          %v1170 = vmul.f32 %v1166, 1.442695
          %v1171 = vpow.pop %v1170
          %v1172 = vmul.f32 %v1167, 1.442695
          %v1173 = vpow.pop %v1172
          %v1174 = vmul.f32 %v1168, 1.442695
          %v1175 = vpow.pop %v1174
          %v1176 = vmul.f32 %v1169, 1.442695
          %v1177 = vpow.pop %v1176
          %1179 = vset.pattern.permute.xlu0 0
          %1180 = vperm.xlu0 %1179, %v1162
          %v1181 = vpop.permute.xlu0 %1180
          %1184 = vset.pattern.permute.xlu0 0
          %1185 = vperm.xlu0 %1184, %v1163
          %v1186 = vpop.permute.xlu0 %1185
          %1189 = vset.pattern.permute.xlu0 0
          %1190 = vperm.xlu0 %1189, %v1164
          %v1191 = vpop.permute.xlu0 %1190
          %1194 = vset.pattern.permute.xlu0 0
          %1195 = vperm.xlu0 %1194, %v1165
          %v1196 = vpop.permute.xlu0 %1195
          %v1198 = vsub.f32 %v1142, %v1181
          %v1199 = vsub.f32 %v1143, %v1186
          %v1200 = vsub.f32 %v1144, %v1191
          %v1201 = vsub.f32 %v1145, %v1196
          %v1202 = vmul.f32 %v1198, 1.442695
          %v1203 = vpow.pop %v1202
          %v1204 = vmul.f32 %v1199, 1.442695
          %v1205 = vpow.pop %v1204
          %v1206 = vmul.f32 %v1200, 1.442695
          %v1207 = vpow.pop %v1206
          %v1208 = vmul.f32 %v1201, 1.442695
          %v1209 = vpow.pop %v1208
          %v1210 = vld [vmem:[#allocation5] sm:$0xff]
          %v1211 = vld [vmem:[#allocation5 + $0x8] sm:$0xff]
          %v1212 = vld [vmem:[#allocation5 + $0x10] sm:$0xff]
          %v1213 = vld [vmem:[#allocation5 + $0x18] sm:$0xff]
          %v1214 = vmul.f32 %v1171, %v1210
          %v1215 = vmul.f32 %v1173, %v1211
          %v1216 = vmul.f32 %v1175, %v1212
          %v1217 = vmul.f32 %v1177, %v1213
          %v1218 = vsel %vm830, %v1203, 0.0
          %1219 = vadd.xlane.f32.xlu0 %v1218
          %v1220 = vpop.xlane.xlu0 %1219
          %v1221 = vsel %vm830, %v1205, 0.0
          %1222 = vadd.xlane.f32.xlu0 %v1221
          %v1223 = vpop.xlane.xlu0 %1222
          %v1224 = vsel %vm830, %v1207, 0.0
          %1225 = vadd.xlane.f32.xlu0 %v1224
          %v1226 = vpop.xlane.xlu0 %1225
          %v1227 = vsel %vm830, %v1209, 0.0
          %1228 = vadd.xlane.f32.xlu0 %v1227
          %v1229 = vpop.xlane.xlu0 %1228
          %v1230 = vadd.f32 %v1214, %v1220
          %v1231 = vadd.f32 %v1215, %v1223
          %v1232 = vadd.f32 %v1216, %v1226
          %v1233 = vadd.f32 %v1217, %v1229
          %vm1234 = vcmask 7168
          %1235 = vst.msk [vmem:[#allocation5] sm:$0xff] %vm1234, %v1230
          %1236 = vst.msk [vmem:[#allocation5 + $0x8] sm:$0xff] %vm1234, %v1231
          %1237 = vst.msk [vmem:[#allocation5 + $0x10] sm:$0xff] %vm1234, %v1232
          %1238 = vst.msk [vmem:[#allocation5 + $0x18] sm:$0xff] %vm1234, %v1233
          %v1239 = vld [vmem:[#allocation6] sm:$0xff]
          %v1240 = vld [vmem:[#allocation6 + $0x8] sm:$0xff]
          %v1241 = vld [vmem:[#allocation6 + $0x10] sm:$0xff]
          %v1242 = vld [vmem:[#allocation6 + $0x18] sm:$0xff]
          %1244 = vset.pattern.permute.xlu0 0
          %1245 = vperm.xlu0 %1244, %v1171
          %v1246 = vpop.permute.xlu0 %1245
          %1249 = vset.pattern.permute.xlu0 0
          %1250 = vperm.xlu0 %1249, %v1173
          %v1251 = vpop.permute.xlu0 %1250
          %1254 = vset.pattern.permute.xlu0 0
          %1255 = vperm.xlu0 %1254, %v1175
          %v1256 = vpop.permute.xlu0 %1255
          %1259 = vset.pattern.permute.xlu0 0
          %1260 = vperm.xlu0 %1259, %v1177
          %v1261 = vpop.permute.xlu0 %1260
          %v1263 = vmul.f32 %v1246, %v1239
          %v1264 = vmul.f32 %v1251, %v1240
          %v1265 = vmul.f32 %v1256, %v1241
          %v1266 = vmul.f32 %v1261, %v1242
          %v1268 = vsel %vm830, %v1203, 0
          %1270 = vmatprep.subr.mxu0 0.0
          %1271 = vmatpush1.msra.mxu0 0.0
          %1272 = vmatprep.subr.mxu0 0.0
          %1273 = vmatpush1.msra.mxu0 0.0
          %1274 = vmatprep.subr.mxu0 0.0
          %1275 = vmatpush1.msra.mxu0 0.0
          %1276 = vmatprep.subr.mxu0 0.0
          %1277 = vmatpush1.msra.mxu0 0.0
          %1278 = vmatprep.subr.mxu0 0.0
          %1279 = vmatpush1.msra.mxu0 0.0
          %1280 = vmatprep.subr.mxu0 0.0
          %1281 = vmatpush1.msra.mxu0 0.0
          %1282 = vmatprep.subr.mxu0 0.0
          %1283 = vmatpush1.msra.mxu0 0.0
          %1284 = vmatprep.subr.mxu0 0.0
          %1285 = vmatpush1.msra.mxu0 0.0
          %1286 = vmatprep.subr.mxu0 0.0
          %1287 = vmatpush1.msra.mxu0 0.0
          %1288 = vmatprep.subr.mxu0 0.0
          %1289 = vmatpush1.msra.mxu0 0.0
          %1290 = vmatprep.subr.mxu0 0.0
          %1291 = vmatpush1.msra.mxu0 0.0
          %1292 = vmatprep.subr.mxu0 0.0
          %1293 = vmatpush1.msra.mxu0 0.0
          %1294 = vmatprep.subr.mxu0 0.0
          %1295 = vmatpush1.msra.mxu0 0.0
          %1296 = vmatprep.subr.mxu0 0.0
          %1297 = vmatpush1.msra.mxu0 0.0
          %1298 = vmatprep.subr.mxu0 0.0
          %1299 = vmatpush1.msra.mxu0 0.0
          %1300 = vmatprep.subr.mxu0 0.0
          %1301 = vmatpush1.msra.mxu0 %v806
          %1302 = vmatprep.subr.mxu0 0.0
          %1303 = vmatpush2.msra.mxu0 0.0
          %1304 = vmatprep.subr.mxu0 0.0
          %1305 = vmatpush2.msra.mxu0 0.0
          %1306 = vmatprep.subr.mxu0 0.0
          %1307 = vmatpush2.msra.mxu0 0.0
          %1308 = vmatprep.subr.mxu0 0.0
          %1309 = vmatpush2.msra.mxu0 0.0
          %1310 = vmatprep.subr.mxu0 0.0
          %1311 = vmatpush2.msra.mxu0 0.0
          %1312 = vmatprep.subr.mxu0 0.0
          %1313 = vmatpush2.msra.mxu0 0.0
          %1314 = vmatprep.subr.mxu0 0.0
          %1315 = vmatpush2.msra.mxu0 0.0
          %1316 = vmatprep.subr.mxu0 0.0
          %1317 = vmatpush2.msra.mxu0 0.0
          %1318 = vmatprep.subr.mxu0 0.0
          %1319 = vmatpush2.msra.mxu0 0.0
          %1320 = vmatprep.subr.mxu0 0.0
          %1321 = vmatpush2.msra.mxu0 0.0
          %1322 = vmatprep.subr.mxu0 0.0
          %1323 = vmatpush2.msra.mxu0 0.0
          %1324 = vmatprep.subr.mxu0 0.0
          %1325 = vmatpush2.msra.mxu0 0.0
          %1326 = vmatprep.subr.mxu0 0.0
          %1327 = vmatpush2.msra.mxu0 0.0
          %1328 = vmatprep.subr.mxu0 0.0
          %1329 = vmatpush2.msra.mxu0 0.0
          %1330 = vmatprep.subr.mxu0 0.0
          %1331 = vmatpush2.msra.mxu0 0.0
          %1332 = vmatprep.subr.mxu0 0.0
          %1333 = vmatpush2.msra.mxu0 0.0
          %1334 = vmatprep.mubr.f32.mxu0 0.0
          %1335 = vmatmul.mubr.f32.gmra.mxu0 %v1268
          %v1336 = vpop.f32.mrf.mxu0
          %v1337 = vadd.f32 0.0, %v1336
          %v1338 = vpop.f32.mrf.mxu0
          %1339 = vdwg.mxu0
          %v1341 = vsel %vm830, %v1205, 0
          %1343 = vmatprep.subr.mxu0 0.0
          %1344 = vmatpush1.msra.mxu0 0.0
          %1345 = vmatprep.subr.mxu0 0.0
          %1346 = vmatpush1.msra.mxu0 0.0
          %1347 = vmatprep.subr.mxu0 0.0
          %1348 = vmatpush1.msra.mxu0 0.0
          %1349 = vmatprep.subr.mxu0 0.0
          %1350 = vmatpush1.msra.mxu0 0.0
          %1351 = vmatprep.subr.mxu0 0.0
          %1352 = vmatpush1.msra.mxu0 0.0
          %1353 = vmatprep.subr.mxu0 0.0
          %1354 = vmatpush1.msra.mxu0 0.0
          %1355 = vmatprep.subr.mxu0 0.0
          %1356 = vmatpush1.msra.mxu0 0.0
          %1357 = vmatprep.subr.mxu0 0.0
          %1358 = vmatpush1.msra.mxu0 0.0
          %1359 = vmatprep.subr.mxu0 0.0
          %1360 = vmatpush1.msra.mxu0 0.0
          %1361 = vmatprep.subr.mxu0 0.0
          %1362 = vmatpush1.msra.mxu0 0.0
          %1363 = vmatprep.subr.mxu0 0.0
          %1364 = vmatpush1.msra.mxu0 0.0
          %1365 = vmatprep.subr.mxu0 0.0
          %1366 = vmatpush1.msra.mxu0 0.0
          %1367 = vmatprep.subr.mxu0 0.0
          %1368 = vmatpush1.msra.mxu0 0.0
          %1369 = vmatprep.subr.mxu0 0.0
          %1370 = vmatpush1.msra.mxu0 0.0
          %1371 = vmatprep.subr.mxu0 0.0
          %1372 = vmatpush1.msra.mxu0 0.0
          %1373 = vmatprep.subr.mxu0 0.0
          %1374 = vmatpush1.msra.mxu0 %v818
          %1375 = vmatprep.subr.mxu0 0.0
          %1376 = vmatpush2.msra.mxu0 0.0
          %1377 = vmatprep.subr.mxu0 0.0
          %1378 = vmatpush2.msra.mxu0 0.0
          %1379 = vmatprep.subr.mxu0 0.0
          %1380 = vmatpush2.msra.mxu0 0.0
          %1381 = vmatprep.subr.mxu0 0.0
          %1382 = vmatpush2.msra.mxu0 0.0
          %1383 = vmatprep.subr.mxu0 0.0
          %1384 = vmatpush2.msra.mxu0 0.0
          %1385 = vmatprep.subr.mxu0 0.0
          %1386 = vmatpush2.msra.mxu0 0.0
          %1387 = vmatprep.subr.mxu0 0.0
          %1388 = vmatpush2.msra.mxu0 0.0
          %1389 = vmatprep.subr.mxu0 0.0
          %1390 = vmatpush2.msra.mxu0 0.0
          %1391 = vmatprep.subr.mxu0 0.0
          %1392 = vmatpush2.msra.mxu0 0.0
          %1393 = vmatprep.subr.mxu0 0.0
          %1394 = vmatpush2.msra.mxu0 0.0
          %1395 = vmatprep.subr.mxu0 0.0
          %1396 = vmatpush2.msra.mxu0 0.0
          %1397 = vmatprep.subr.mxu0 0.0
          %1398 = vmatpush2.msra.mxu0 0.0
          %1399 = vmatprep.subr.mxu0 0.0
          %1400 = vmatpush2.msra.mxu0 0.0
          %1401 = vmatprep.subr.mxu0 0.0
          %1402 = vmatpush2.msra.mxu0 0.0
          %1403 = vmatprep.subr.mxu0 0.0
          %1404 = vmatpush2.msra.mxu0 0.0
          %1405 = vmatprep.subr.mxu0 0.0
          %1406 = vmatpush2.msra.mxu0 0.0
          %1407 = vmatprep.mubr.f32.mxu0 0.0
          %1408 = vmatmul.mubr.f32.gmra.mxu0 %v1341
          %v1409 = vpop.f32.mrf.mxu0
          %v1410 = vadd.f32 0.0, %v1409
          %v1411 = vpop.f32.mrf.mxu0
          %1412 = vdwg.mxu0
          %v1414 = vsel %vm830, %v1207, 0
          %1416 = vmatprep.subr.mxu0 0.0
          %1417 = vmatpush1.msra.mxu0 0.0
          %1418 = vmatprep.subr.mxu0 0.0
          %1419 = vmatpush1.msra.mxu0 0.0
          %1420 = vmatprep.subr.mxu0 0.0
          %1421 = vmatpush1.msra.mxu0 0.0
          %1422 = vmatprep.subr.mxu0 0.0
          %1423 = vmatpush1.msra.mxu0 0.0
          %1424 = vmatprep.subr.mxu0 0.0
          %1425 = vmatpush1.msra.mxu0 0.0
          %1426 = vmatprep.subr.mxu0 0.0
          %1427 = vmatpush1.msra.mxu0 0.0
          %1428 = vmatprep.subr.mxu0 0.0
          %1429 = vmatpush1.msra.mxu0 0.0
          %1430 = vmatprep.subr.mxu0 0.0
          %1431 = vmatpush1.msra.mxu0 0.0
          %1432 = vmatprep.subr.mxu0 0.0
          %1433 = vmatpush1.msra.mxu0 0.0
          %1434 = vmatprep.subr.mxu0 0.0
          %1435 = vmatpush1.msra.mxu0 0.0
          %1436 = vmatprep.subr.mxu0 0.0
          %1437 = vmatpush1.msra.mxu0 0.0
          %1438 = vmatprep.subr.mxu0 0.0
          %1439 = vmatpush1.msra.mxu0 0.0
          %1440 = vmatprep.subr.mxu0 0.0
          %1441 = vmatpush1.msra.mxu0 0.0
          %1442 = vmatprep.subr.mxu0 0.0
          %1443 = vmatpush1.msra.mxu0 0.0
          %1444 = vmatprep.subr.mxu0 0.0
          %1445 = vmatpush1.msra.mxu0 0.0
          %1446 = vmatprep.subr.mxu0 0.0
          %1447 = vmatpush1.msra.mxu0 %v821
          %1448 = vmatprep.subr.mxu0 0.0
          %1449 = vmatpush2.msra.mxu0 0.0
          %1450 = vmatprep.subr.mxu0 0.0
          %1451 = vmatpush2.msra.mxu0 0.0
          %1452 = vmatprep.subr.mxu0 0.0
          %1453 = vmatpush2.msra.mxu0 0.0
          %1454 = vmatprep.subr.mxu0 0.0
          %1455 = vmatpush2.msra.mxu0 0.0
          %1456 = vmatprep.subr.mxu0 0.0
          %1457 = vmatpush2.msra.mxu0 0.0
          %1458 = vmatprep.subr.mxu0 0.0
          %1459 = vmatpush2.msra.mxu0 0.0
          %1460 = vmatprep.subr.mxu0 0.0
          %1461 = vmatpush2.msra.mxu0 0.0
          %1462 = vmatprep.subr.mxu0 0.0
          %1463 = vmatpush2.msra.mxu0 0.0
          %1464 = vmatprep.subr.mxu0 0.0
          %1465 = vmatpush2.msra.mxu0 0.0
          %1466 = vmatprep.subr.mxu0 0.0
          %1467 = vmatpush2.msra.mxu0 0.0
          %1468 = vmatprep.subr.mxu0 0.0
          %1469 = vmatpush2.msra.mxu0 0.0
          %1470 = vmatprep.subr.mxu0 0.0
          %1471 = vmatpush2.msra.mxu0 0.0
          %1472 = vmatprep.subr.mxu0 0.0
          %1473 = vmatpush2.msra.mxu0 0.0
          %1474 = vmatprep.subr.mxu0 0.0
          %1475 = vmatpush2.msra.mxu0 0.0
          %1476 = vmatprep.subr.mxu0 0.0
          %1477 = vmatpush2.msra.mxu0 0.0
          %1478 = vmatprep.subr.mxu0 0.0
          %1479 = vmatpush2.msra.mxu0 0.0
          %1480 = vmatprep.mubr.f32.mxu0 0.0
          %1481 = vmatmul.mubr.f32.gmra.mxu0 %v1414
          %v1482 = vpop.f32.mrf.mxu0
          %v1483 = vadd.f32 0.0, %v1482
          %v1484 = vpop.f32.mrf.mxu0
          %1485 = vdwg.mxu0
          %v1487 = vsel %vm830, %v1209, 0
          %1489 = vmatprep.subr.mxu0 0.0
          %1490 = vmatpush1.msra.mxu0 0.0
          %1491 = vmatprep.subr.mxu0 0.0
          %1492 = vmatpush1.msra.mxu0 0.0
          %1493 = vmatprep.subr.mxu0 0.0
          %1494 = vmatpush1.msra.mxu0 0.0
          %1495 = vmatprep.subr.mxu0 0.0
          %1496 = vmatpush1.msra.mxu0 0.0
          %1497 = vmatprep.subr.mxu0 0.0
          %1498 = vmatpush1.msra.mxu0 0.0
          %1499 = vmatprep.subr.mxu0 0.0
          %1500 = vmatpush1.msra.mxu0 0.0
          %1501 = vmatprep.subr.mxu0 0.0
          %1502 = vmatpush1.msra.mxu0 0.0
          %1503 = vmatprep.subr.mxu0 0.0
          %1504 = vmatpush1.msra.mxu0 0.0
          %1505 = vmatprep.subr.mxu0 0.0
          %1506 = vmatpush1.msra.mxu0 0.0
          %1507 = vmatprep.subr.mxu0 0.0
          %1508 = vmatpush1.msra.mxu0 0.0
          %1509 = vmatprep.subr.mxu0 0.0
          %1510 = vmatpush1.msra.mxu0 0.0
          %1511 = vmatprep.subr.mxu0 0.0
          %1512 = vmatpush1.msra.mxu0 0.0
          %1513 = vmatprep.subr.mxu0 0.0
          %1514 = vmatpush1.msra.mxu0 0.0
          %1515 = vmatprep.subr.mxu0 0.0
          %1516 = vmatpush1.msra.mxu0 0.0
          %1517 = vmatprep.subr.mxu0 0.0
          %1518 = vmatpush1.msra.mxu0 0.0
          %1519 = vmatprep.subr.mxu0 0.0
          %1520 = vmatpush1.msra.mxu0 %v824
          %1521 = vmatprep.subr.mxu0 0.0
          %1522 = vmatpush2.msra.mxu0 0.0
          %1523 = vmatprep.subr.mxu0 0.0
          %1524 = vmatpush2.msra.mxu0 0.0
          %1525 = vmatprep.subr.mxu0 0.0
          %1526 = vmatpush2.msra.mxu0 0.0
          %1527 = vmatprep.subr.mxu0 0.0
          %1528 = vmatpush2.msra.mxu0 0.0
          %1529 = vmatprep.subr.mxu0 0.0
          %1530 = vmatpush2.msra.mxu0 0.0
          %1531 = vmatprep.subr.mxu0 0.0
          %1532 = vmatpush2.msra.mxu0 0.0
          %1533 = vmatprep.subr.mxu0 0.0
          %1534 = vmatpush2.msra.mxu0 0.0
          %1535 = vmatprep.subr.mxu0 0.0
          %1536 = vmatpush2.msra.mxu0 0.0
          %1537 = vmatprep.subr.mxu0 0.0
          %1538 = vmatpush2.msra.mxu0 0.0
          %1539 = vmatprep.subr.mxu0 0.0
          %1540 = vmatpush2.msra.mxu0 0.0
          %1541 = vmatprep.subr.mxu0 0.0
          %1542 = vmatpush2.msra.mxu0 0.0
          %1543 = vmatprep.subr.mxu0 0.0
          %1544 = vmatpush2.msra.mxu0 0.0
          %1545 = vmatprep.subr.mxu0 0.0
          %1546 = vmatpush2.msra.mxu0 0.0
          %1547 = vmatprep.subr.mxu0 0.0
          %1548 = vmatpush2.msra.mxu0 0.0
          %1549 = vmatprep.subr.mxu0 0.0
          %1550 = vmatpush2.msra.mxu0 0.0
          %1551 = vmatprep.subr.mxu0 0.0
          %1552 = vmatpush2.msra.mxu0 0.0
          %1553 = vmatprep.mubr.f32.mxu0 0.0
          %1554 = vmatmul.mubr.f32.gmra.mxu0 %v1487
          %v1555 = vpop.f32.mrf.mxu0
          %v1556 = vadd.f32 0.0, %v1555
          %v1557 = vpop.f32.mrf.mxu0
          %1558 = vdwg.mxu0
          %v1559 = vadd.f32 %v1263, %v1337
          %v1560 = vadd.f32 %v1264, %v1410
          %v1561 = vadd.f32 %v1265, %v1483
          %v1562 = vadd.f32 %v1266, %v1556
          %1563 = vst.msk [vmem:[#allocation6] sm:$0xff] %vm830, %v1559
          %1564 = vst.msk [vmem:[#allocation6 + $0x8] sm:$0xff] %vm830, %v1560
          %1565 = vst.msk [vmem:[#allocation6 + $0x10] sm:$0xff] %vm830, %v1561
          %1566 = vst.msk [vmem:[#allocation6 + $0x18] sm:$0xff] %vm830, %v1562
          %1567 = vst.msk [vmem:[#allocation4] sm:$0xff] %vm1234, %v1162
          %1568 = vst.msk [vmem:[#allocation4 + $0x8] sm:$0xff] %vm1234, %v1163
          %1569 = vst.msk [vmem:[#allocation4 + $0x10] sm:$0xff] %vm1234, %v1164
          %1570 = vst.msk [vmem:[#allocation4 + $0x18] sm:$0xff] %vm1234, %v1165
        $region80: #{tpu_custom_call.1} parent=51 // pred_fallthru
          _
        // Predicated region
        $region81: #{tpu_custom_call.1} parent=51 // pred_check
          %p1571 = pneg %p453
        $region82: #{tpu_custom_call.1} parent=51 // pred_check_branch
          %1573 = sbr.rel (%p1571) target = $region84
        $region83: #{tpu_custom_call.1} parent=51 // pred_region
          %v1574 = vld [vmem:[#allocation6] sm:$0xff]
          %v1575 = vld [vmem:[#allocation6 + $0x8] sm:$0xff]
          %v1576 = vld [vmem:[#allocation6 + $0x10] sm:$0xff]
          %v1577 = vld [vmem:[#allocation6 + $0x18] sm:$0xff]
          %v1578 = vld [vmem:[#allocation5] sm:$0xff]
          %v1579 = vld [vmem:[#allocation5 + $0x8] sm:$0xff]
          %v1580 = vld [vmem:[#allocation5 + $0x10] sm:$0xff]
          %v1581 = vld [vmem:[#allocation5 + $0x18] sm:$0xff]
          %v1582 = vrcp.pop %v1578
          %v1583 = vrcp.pop %v1579
          %v1584 = vrcp.pop %v1580
          %v1585 = vrcp.pop %v1581
          %1587 = vset.pattern.permute.xlu0 0
          %1588 = vperm.xlu0 %1587, %v1582
          %v1589 = vpop.permute.xlu0 %1588
          %1592 = vset.pattern.permute.xlu0 0
          %1593 = vperm.xlu0 %1592, %v1583
          %v1594 = vpop.permute.xlu0 %1593
          %1597 = vset.pattern.permute.xlu0 0
          %1598 = vperm.xlu0 %1597, %v1584
          %v1599 = vpop.permute.xlu0 %1598
          %1602 = vset.pattern.permute.xlu0 0
          %1603 = vperm.xlu0 %1602, %v1585
          %v1604 = vpop.permute.xlu0 %1603
          %v1606 = vmul.f32 %v1574, %v1589
          %v1607 = vmul.f32 %v1575, %v1594
          %v1608 = vmul.f32 %v1576, %v1599
          %v1609 = vmul.f32 %v1577, %v1604
          %1611 = vrot.lane.b32.xlu0 %v1607, 8
          %v1612 = vpop.permute.xlu0 %1611
          %1615 = vrot.lane.b32.xlu0 %v1608, 16
          %v1616 = vpop.permute.xlu0 %1615
          %1619 = vrot.lane.b32.xlu0 %v1609, 24
          %v1620 = vpop.permute.xlu0 %1619
          %vm1622 = vcmask 64512
          %v1623 = vsel %vm1622, %v1606, %v1612
          %vm1624 = vcmask 130048
          %v1625 = vsel %vm1624, %v1623, %v1616
          %vm1626 = vcmask 195584
          %v1627 = vsel %vm1626, %v1625, %v1620
          %v1628 = vld [vmem:[#allocation15] sm:$0xff]
          %v1629 = vld [vmem:[#allocation15 + $0x8] sm:$0xff]
          %v1630 = vld [vmem:[#allocation15 + $0x10] sm:$0xff]
          %v1631 = vld [vmem:[#allocation15 + $0x18] sm:$0xff]
          %v1632 = vld [vmem:[%s7] sm:$0x1]
          %v1634 = vlaneseq
          %v1635 = vshrl.u32 %v1634, 7
          %v1636 = vsub.s32 0, %v1635
          %v1637 = vrot.slane %v1632, %v1636
          %vm1639 = vcmask 261120
          %v1641 = vsel %vm1639, %v1627, 0
          %1643 = vmatprep.subr.mxu0 0.0
          %1644 = vmatpush1.msra.mxu0 0.0
          %1645 = vmatprep.subr.mxu0 0.0
          %1646 = vmatpush1.msra.mxu0 0.0
          %1647 = vmatprep.subr.mxu0 0.0
          %1648 = vmatpush1.msra.mxu0 0.0
          %1649 = vmatprep.subr.mxu0 0.0
          %1650 = vmatpush1.msra.mxu0 0.0
          %1651 = vmatprep.subr.mxu0 0.0
          %1652 = vmatpush1.msra.mxu0 0.0
          %1653 = vmatprep.subr.mxu0 0.0
          %1654 = vmatpush1.msra.mxu0 0.0
          %1655 = vmatprep.subr.mxu0 0.0
          %1656 = vmatpush1.msra.mxu0 0.0
          %1657 = vmatprep.subr.mxu0 0.0
          %1658 = vmatpush1.msra.mxu0 0.0
          %1659 = vmatprep.subr.mxu0 0.0
          %1660 = vmatpush1.msra.mxu0 0.0
          %1661 = vmatprep.subr.mxu0 0.0
          %1662 = vmatpush1.msra.mxu0 0.0
          %1663 = vmatprep.subr.mxu0 0.0
          %1664 = vmatpush1.msra.mxu0 0.0
          %1665 = vmatprep.subr.mxu0 0.0
          %1666 = vmatpush1.msra.mxu0 0.0
          %1667 = vmatprep.subr.mxu0 0.0
          %1668 = vmatpush1.msra.mxu0 %v1631
          %1669 = vmatprep.subr.mxu0 0.0
          %1670 = vmatpush1.msra.mxu0 %v1630
          %1671 = vmatprep.subr.mxu0 0.0
          %1672 = vmatpush1.msra.mxu0 %v1629
          %1673 = vmatprep.subr.mxu0 0.0
          %1674 = vmatpush1.msra.mxu0 %v1628
          %1675 = vmatprep.subr.mxu0 0.0
          %1676 = vmatpush2.msra.mxu0 0.0
          %1677 = vmatprep.subr.mxu0 0.0
          %1678 = vmatpush2.msra.mxu0 0.0
          %1679 = vmatprep.subr.mxu0 0.0
          %1680 = vmatpush2.msra.mxu0 0.0
          %1681 = vmatprep.subr.mxu0 0.0
          %1682 = vmatpush2.msra.mxu0 0.0
          %1683 = vmatprep.subr.mxu0 0.0
          %1684 = vmatpush2.msra.mxu0 0.0
          %1685 = vmatprep.subr.mxu0 0.0
          %1686 = vmatpush2.msra.mxu0 0.0
          %1687 = vmatprep.subr.mxu0 0.0
          %1688 = vmatpush2.msra.mxu0 0.0
          %1689 = vmatprep.subr.mxu0 0.0
          %1690 = vmatpush2.msra.mxu0 0.0
          %1691 = vmatprep.subr.mxu0 0.0
          %1692 = vmatpush2.msra.mxu0 0.0
          %1693 = vmatprep.subr.mxu0 0.0
          %1694 = vmatpush2.msra.mxu0 0.0
          %1695 = vmatprep.subr.mxu0 0.0
          %1696 = vmatpush2.msra.mxu0 0.0
          %1697 = vmatprep.subr.mxu0 0.0
          %1698 = vmatpush2.msra.mxu0 0.0
          %1699 = vmatprep.subr.mxu0 0.0
          %1700 = vmatpush2.msra.mxu0 0.0
          %1701 = vmatprep.subr.mxu0 0.0
          %1702 = vmatpush2.msra.mxu0 0.0
          %1703 = vmatprep.subr.mxu0 0.0
          %1704 = vmatpush2.msra.mxu0 0.0
          %1705 = vmatprep.subr.mxu0 0.0
          %1706 = vmatpush2.msra.mxu0 0.0
          %1707 = vmatprep.mubr.f32.mxu0 0.0
          %1708 = vmatmul.mubr.f32.gmra.mxu0 %v1641
          %v1709 = vpop.f32.mrf.mxu0
          %v1710 = vadd.f32 %v1637, %v1709
          %v1711 = vpop.f32.mrf.mxu0
          %1712 = vdwg.mxu0
          %v1713 = vld [vmem:[#allocation2] sm:$0xff]
          %v1714 = vadd.f32 %v1713, %v1710
          %1715 = vst.msk [vmem:[%s450] sm:$0xff] %vm1639, %v1714
        $region84: #{tpu_custom_call.1} parent=51 // pred_fallthru
          _
        %s1716 = sand.u32 %s247, 1
        %s1717 = scalar_lea.sflag [#allocation9], %s1716
        %s1718 = sand.u32 %s247, 1
        %s1719 = smul.addr %s1718, 8
        %s1720 = scalar_lea.vmem [#allocation16], %s1719
        // Predicated region
        $region85: #{tpu_custom_call.1} parent=51 // pred_check
          %p1721 = pneg %p257
        $region86: #{tpu_custom_call.1} parent=51 // pred_check_branch
          %1723 = sbr.rel (%p1721) target = $region88
        $region87: #{tpu_custom_call.1} parent=51 // pred_region
          %s1725 = ssub.s32 128, 128
          %1726 = vsyncadd %s1717, %s1725
          %s1727 = sadd.s32 %s35, %s34
          %s1728 = smul.addr %s1727, 128
          %s1729 = scalar_lea.hbm %s8, %s1728
          %s1731 = sshll.u32 %s1720, 4
          %s1732 = int_to_ptr.vmem [resolvable:$true] %s1731
          %1734 = dma.vmem_to_hbm [thread:$0]  %s1732, 128, %s1729, %s1717
        $region88: #{tpu_custom_call.1} parent=51 // pred_fallthru
          _
      $region52: #{tpu_custom_call.1} parent=5 // pred_fallthru
        _
      %p1735 = scmp.le.s32.totalorder 2, %s24
      // Predicated region
      $region89: #{tpu_custom_call.1} parent=5 // pred_check
        %p1736 = pneg %p1735
      $region90: #{tpu_custom_call.1} parent=5 // pred_check_branch
        %1738 = sbr.rel (%p1736) target = $region92
      $region91: #{tpu_custom_call.1} parent=5 // pred_region
        %s1739 = ssub.s32 %s24, 2
        // Predicated region
        $region93: #{tpu_custom_call.1} parent=91 // pred_check
          %p1740 = pneg %p263
        $region94: #{tpu_custom_call.1} parent=91 // pred_check_branch
          %1742 = sbr.rel (%p1740) target = $region96
        $region95: #{tpu_custom_call.1} parent=91 // pred_region
          %s1743 = sand.u32 %s248, 1
          %s1744 = scalar_lea.sflag [#allocation9], %s1743
          %s1745 = sand.u32 %s248, 1
          %s1746 = smul.addr %s1745, 8
          %s1747 = scalar_lea.vmem [#allocation16], %s1746
          %1748 = dma.done %s1744, 128
        $region96: #{tpu_custom_call.1} parent=91 // pred_fallthru
          _
      $region92: #{tpu_custom_call.1} parent=5 // pred_fallthru
        _
    $region6: #{tpu_custom_call.1} parent=1 // loop_footer
      %s28 = sadd.s32 1, %s24
    $region7: #{tpu_custom_call.1} parent=1 // loop_footer_branch
      %23 = sbr.rel target = $region3
    $region8: #{tpu_custom_call.1} parent=1 // loop_exit
      _
    %1749 = vsyncpa [#allocation8], 1
    %s1750 = scalar_lea.sflag [#allocation8], 1
    %1751 = vsyncpa %s1750, 1
    %1752 = vsyncpa [#allocation11], 1
    %s1753 = scalar_lea.sflag [#allocation11], 1
    %1754 = vsyncpa %s1753, 1
    %1755 = vsyncpa [#allocation14], 1
    %1756 = vsyncpa [#allocation9], 1
    %s1757 = scalar_lea.sflag [#allocation9], 1
    %1758 = vsyncpa %s1757, 1

</llo_original>
